<compile_context>
chip_gen: v7x
topology: tpu7x:2x2x1
jax: 0.10.0
libtpu: 0.0.40
codegen_flags: <defaults>
</compile_context>

<pallas_src>
import functools

import jax
import jax.numpy as jnp
from jax.experimental import pallas as pl
from jax.experimental.pallas import tpu as pltpu

HIDDEN = 512
HEAD_PAD = 128          # lane-dense fused head width: [mu | log_std | zero pad]
LOG_STD_MIN = -20.0
LOG_STD_MAX = 2.0


def _actor_kernel(log_std_min, log_std_max, action_dim,
                  x_ref,
                  w1_ref, b1_ref,
                  w2_ref, b2_ref,
                  w3_ref, b3_ref,
                  w4_ref, b4_ref,
                  wh_ref, bh_ref,
                  out_ref):
    # bf16 activations, f32 MXU accumulation, f32 biases.
    h = x_ref[...]
    h = jnp.dot(h, w1_ref[...], preferred_element_type=jnp.float32) + b1_ref[...]
    h = jnp.maximum(h, 0.0).astype(jnp.bfloat16)

    h = jnp.dot(h, w2_ref[...], preferred_element_type=jnp.float32) + b2_ref[...]
    h = jnp.maximum(h, 0.0).astype(jnp.bfloat16)

    h = jnp.dot(h, w3_ref[...], preferred_element_type=jnp.float32) + b3_ref[...]
    h = jnp.maximum(h, 0.0).astype(jnp.bfloat16)

    h = jnp.dot(h, w4_ref[...], preferred_element_type=jnp.float32) + b4_ref[...]
    h = jnp.maximum(h, 0.0).astype(jnp.bfloat16)

    # Fused head: columns [0, A) = mu, [A, 2A) = log_std, rest = zero padding.
    y = jnp.dot(h, wh_ref[...], preferred_element_type=jnp.float32) + bh_ref[...]
    col = jax.lax.broadcasted_iota(jnp.int32, y.shape, dimension=1)
    y = jnp.where(col >= action_dim,
                  jnp.clip(y, log_std_min, log_std_max), y)

    out_ref[...] = y.astype(out_ref.dtype)   # single lane-dense (TM, 128) store


def init_actor_params(key, state_dim, action_dim):
    """f32 params mimicking PyTorch nn.Linear default init (U[-1/sqrt(in), 1/sqrt(in)]).
    Weights stored as (in, out); biases as (1, out)."""
    dims = [
        ("1", state_dim, HIDDEN),
        ("2", HIDDEN, HIDDEN),
        ("3", HIDDEN, HIDDEN),
        ("4", HIDDEN, HIDDEN),
        ("m", HIDDEN, action_dim),
        ("l", HIDDEN, action_dim),
    ]
    params = {}
    for name, fan_in, fan_out in dims:
        key, kw, kb = jax.random.split(key, 3)
        bound = 1.0 / (fan_in ** 0.5)
        params["w" + name] = jax.random.uniform(
            kw, (fan_in, fan_out), jnp.float32, minval=-bound, maxval=bound)
        params["b" + name] = jax.random.uniform(
            kb, (1, fan_out), jnp.float32, minval=-bound, maxval=bound)
    return params


def prepare_actor_params(params_f32, action_dim):
    """Cast weights to bf16 and fuse mu/log_std heads into one lane-dense padded head."""
    prepared = {}
    for name in ("1", "2", "3", "4"):
        prepared["w" + name] = params_f32["w" + name].astype(jnp.bfloat16)
        prepared["b" + name] = params_f32["b" + name].astype(jnp.float32)
    wh = jnp.concatenate([params_f32["wm"], params_f32["wl"]], axis=1)
    bh = jnp.concatenate([params_f32["bm"], params_f32["bl"]], axis=1)
    pad = HEAD_PAD - 2 * action_dim
    assert pad >= 0, "action_dim too large for HEAD_PAD; raise HEAD_PAD to next 128 multiple"
    prepared["wh"] = jnp.pad(wh, ((0, 0), (0, pad))).astype(jnp.bfloat16)
    prepared["bh"] = jnp.pad(bh, ((0, 0), (0, pad))).astype(jnp.float32)
    return prepared


def actor_forward(x, prepared, action_dim, *,
                  log_std_min=LOG_STD_MIN, log_std_max=LOG_STD_MAX):
    """x: (batch, state_dim) f32. Returns (mu, log_std) each (batch, action_dim) f32."""
    batch, state_dim = x.shape

    # Batch tiling: one shot for small batches, TM=256 tiles (parallel grid) for large.
    if batch <= 256:
        tm = max(8, -(-batch // 8) * 8)
    else:
        tm = 256
    b_pad = -(-batch // tm) * tm
    if b_pad != batch:
        x = jnp.pad(x, ((0, b_pad - batch), (0, 0)))
    x = x.astype(jnp.bfloat16)
    grid = (b_pad // tm,)

    kernel = functools.partial(_actor_kernel, log_std_min, log_std_max, action_dim)

    const = lambda i: (0, 0)     # weights resident across batch tiles
    weight_specs = []
    weight_args = []
    for name in ("1", "2", "3", "4"):
        for pfx in ("w", "b"):
            arr = prepared[pfx + name]
            weight_specs.append(pl.BlockSpec(arr.shape, const))
            weight_args.append(arr)
    for pfx in ("wh", "bh"):
        arr = prepared[pfx]
        weight_specs.append(pl.BlockSpec(arr.shape, const))
        weight_args.append(arr)

    flops = 2 * b_pad * (state_dim * HIDDEN + 3 * HIDDEN * HIDDEN + HIDDEN * HEAD_PAD)
    weight_bytes = sum(int(v.size) * v.dtype.itemsize for v in weight_args)
    bytes_accessed = weight_bytes + int(x.size) * 2 + b_pad * HEAD_PAD * 4

    out = pl.pallas_call(
        kernel,
        out_shape=jax.ShapeDtypeStruct((b_pad, HEAD_PAD), jnp.float32),
        grid=grid,
        in_specs=[pl.BlockSpec((tm, state_dim), lambda i: (i, 0))] + weight_specs,
        out_specs=pl.BlockSpec((tm, HEAD_PAD), lambda i: (i, 0)),
        compiler_params=pltpu.CompilerParams(
            dimension_semantics=("parallel",)),
        cost_estimate=pl.CostEstimate(
            flops=flops, transcendentals=0, bytes_accessed=bytes_accessed),
    )(x, *weight_args)

    mu = out[:batch, :action_dim]
    log_std = out[:batch, action_dim:2 * action_dim]
    return mu, log_std


def actor_forward_ref(x, params_f32, action_dim):
    """Pure-JAX reference mirroring the kernel's bf16 weight/activation precision."""
    def lin(h, w, b):
        return jnp.dot(h.astype(jnp.bfloat16), w.astype(jnp.bfloat16),
                       preferred_element_type=jnp.float32) + b
    h = jnp.maximum(lin(x, params_f32["w1"], params_f32["b1"]), 0.0)
    h = jnp.maximum(lin(h, params_f32["w2"], params_f32["b2"]), 0.0)
    h = jnp.maximum(lin(h, params_f32["w3"], params_f32["b3"]), 0.0)
    h = jnp.maximum(lin(h, params_f32["w4"], params_f32["b4"]), 0.0)
    mu = lin(h, params_f32["wm"], params_f32["bm"])
    log_std = jnp.clip(lin(h, params_f32["wl"], params_f32["bl"]),
                       LOG_STD_MIN, LOG_STD_MAX)
    return mu, log_std


if __name__ == "__main__":
    key = jax.random.PRNGKey(0)
    k_params, k_x = jax.random.split(key)

    batch = 8
    state_dim = 16
    action_dim = 4

    params_f32 = init_actor_params(k_params, state_dim, action_dim)
    prepared = prepare_actor_params(params_f32, action_dim)
    x = jax.random.normal(k_x, (batch, state_dim), jnp.float32)

    mu, log_std = actor_forward(x, prepared, action_dim)
    jax.block_until_ready((mu, log_std))

    mu_ref, log_std_ref = actor_forward_ref(x, params_f32, action_dim)

    assert mu.shape == (batch, action_dim) and log_std.shape == (batch, action_dim)
    assert jnp.allclose(mu, mu_ref, atol=2e-2, rtol=2e-2)
    assert jnp.allclose(log_std, log_std_ref, atol=2e-2, rtol=2e-2)
    assert bool(jnp.all(log_std <= LOG_STD_MAX)) and bool(jnp.all(log_std >= LOG_STD_MIN))

    print("KERNEL_OK")
</pallas_src>

<mosaic_0001>
module attributes {stable_mosaic.version = 11 : i64} {
  func.func @_actor_kernel(%arg0: i32, %arg1: memref<8x16xbf16, #tpu.memory_space<vmem>>, %arg2: memref<16x512xbf16, #tpu.memory_space<vmem>>, %arg3: memref<1x512xf32, #tpu.memory_space<vmem>>, %arg4: memref<512x512xbf16, #tpu.memory_space<vmem>>, %arg5: memref<1x512xf32, #tpu.memory_space<vmem>>, %arg6: memref<512x512xbf16, #tpu.memory_space<vmem>>, %arg7: memref<1x512xf32, #tpu.memory_space<vmem>>, %arg8: memref<512x512xbf16, #tpu.memory_space<vmem>>, %arg9: memref<1x512xf32, #tpu.memory_space<vmem>>, %arg10: memref<512x128xbf16, #tpu.memory_space<vmem>>, %arg11: memref<1x128xf32, #tpu.memory_space<vmem>>, %arg12: memref<8x128xf32, #tpu.memory_space<vmem>>) attributes {dimension_semantics = [#tpu.dimension_semantics<parallel>], iteration_bounds = array<i64: 1>, scalar_prefetch = 0 : i64, scratch_operands = 0 : i64, tpu.core_type = #tpu.core_type<tc>, window_params = [{transform_indices = @transform_0, window_bounds = array<i64: 8, 16>}, {pipeline_mode = #tpu.pipeline_mode<synchronous>, transform_indices = @transform_1, window_bounds = array<i64: 16, 512>}, {pipeline_mode = #tpu.pipeline_mode<synchronous>, transform_indices = @transform_2, window_bounds = array<i64: 1, 512>}, {pipeline_mode = #tpu.pipeline_mode<synchronous>, transform_indices = @transform_3, window_bounds = array<i64: 512, 512>}, {pipeline_mode = #tpu.pipeline_mode<synchronous>, transform_indices = @transform_4, window_bounds = array<i64: 1, 512>}, {pipeline_mode = #tpu.pipeline_mode<synchronous>, transform_indices = @transform_5, window_bounds = array<i64: 512, 512>}, {pipeline_mode = #tpu.pipeline_mode<synchronous>, transform_indices = @transform_6, window_bounds = array<i64: 1, 512>}, {pipeline_mode = #tpu.pipeline_mode<synchronous>, transform_indices = @transform_7, window_bounds = array<i64: 512, 512>}, {pipeline_mode = #tpu.pipeline_mode<synchronous>, transform_indices = @transform_8, window_bounds = array<i64: 1, 512>}, {pipeline_mode = #tpu.pipeline_mode<synchronous>, transform_indices = @transform_9, window_bounds = array<i64: 512, 128>}, {pipeline_mode = #tpu.pipeline_mode<synchronous>, transform_indices = @transform_10, window_bounds = array<i64: 1, 128>}, {transform_indices = @transform_11, window_bounds = array<i64: 8, 128>}]} {
    %c0 = arith.constant 0 : index
    %c0_0 = arith.constant 0 : index
    %0 = vector.load %arg1[%c0, %c0_0] : memref<8x16xbf16, #tpu.memory_space<vmem>>, vector<8x16xbf16>
    %c0_1 = arith.constant 0 : index
    %c0_2 = arith.constant 0 : index
    %1 = vector.load %arg2[%c0_1, %c0_2] : memref<16x512xbf16, #tpu.memory_space<vmem>>, vector<16x512xbf16>
    %cst = arith.constant dense<0.000000e+00> : vector<8x512xf32>
    %2 = tpu.matmul %0, %1, %cst {dimension_numbers = #tpu.dot_dimension_numbers<[1], [0], [0], [1], [0, 0, 1, 1], [], []>} : vector<8x16xbf16>, vector<16x512xbf16>, vector<8x512xf32> -> vector<8x512xf32>
    %c0_3 = arith.constant 0 : index
    %c0_4 = arith.constant 0 : index
    %3 = vector.load %arg3[%c0_3, %c0_4] : memref<1x512xf32, #tpu.memory_space<vmem>>, vector<1x512xf32>
    %4 = vector.broadcast %3 : vector<1x512xf32> to vector<8x512xf32>
    %5 = arith.addf %2, %4 : vector<8x512xf32>
    %cst_5 = arith.constant 0.000000e+00 : f32
    %6 = vector.broadcast %cst_5 : f32 to vector<8x512xf32>
    %7 = arith.maximumf %5, %6 : vector<8x512xf32>
    %8 = arith.truncf %7 : vector<8x512xf32> to vector<8x512xbf16>
    %c0_6 = arith.constant 0 : index
    %c0_7 = arith.constant 0 : index
    %9 = vector.load %arg4[%c0_6, %c0_7] : memref<512x512xbf16, #tpu.memory_space<vmem>>, vector<512x512xbf16>
    %cst_8 = arith.constant dense<0.000000e+00> : vector<8x512xf32>
    %10 = tpu.matmul %8, %9, %cst_8 {dimension_numbers = #tpu.dot_dimension_numbers<[1], [0], [0], [1], [0, 0, 1, 1], [], []>} : vector<8x512xbf16>, vector<512x512xbf16>, vector<8x512xf32> -> vector<8x512xf32>
    %c0_9 = arith.constant 0 : index
    %c0_10 = arith.constant 0 : index
    %11 = vector.load %arg5[%c0_9, %c0_10] : memref<1x512xf32, #tpu.memory_space<vmem>>, vector<1x512xf32>
    %12 = vector.broadcast %11 : vector<1x512xf32> to vector<8x512xf32>
    %13 = arith.addf %10, %12 : vector<8x512xf32>
    %cst_11 = arith.constant 0.000000e+00 : f32
    %14 = vector.broadcast %cst_11 : f32 to vector<8x512xf32>
    %15 = arith.maximumf %13, %14 : vector<8x512xf32>
    %16 = arith.truncf %15 : vector<8x512xf32> to vector<8x512xbf16>
    %c0_12 = arith.constant 0 : index
    %c0_13 = arith.constant 0 : index
    %17 = vector.load %arg6[%c0_12, %c0_13] : memref<512x512xbf16, #tpu.memory_space<vmem>>, vector<512x512xbf16>
    %cst_14 = arith.constant dense<0.000000e+00> : vector<8x512xf32>
    %18 = tpu.matmul %16, %17, %cst_14 {dimension_numbers = #tpu.dot_dimension_numbers<[1], [0], [0], [1], [0, 0, 1, 1], [], []>} : vector<8x512xbf16>, vector<512x512xbf16>, vector<8x512xf32> -> vector<8x512xf32>
    %c0_15 = arith.constant 0 : index
    %c0_16 = arith.constant 0 : index
    %19 = vector.load %arg7[%c0_15, %c0_16] : memref<1x512xf32, #tpu.memory_space<vmem>>, vector<1x512xf32>
    %20 = vector.broadcast %19 : vector<1x512xf32> to vector<8x512xf32>
    %21 = arith.addf %18, %20 : vector<8x512xf32>
    %cst_17 = arith.constant 0.000000e+00 : f32
    %22 = vector.broadcast %cst_17 : f32 to vector<8x512xf32>
    %23 = arith.maximumf %21, %22 : vector<8x512xf32>
    %24 = arith.truncf %23 : vector<8x512xf32> to vector<8x512xbf16>
    %c0_18 = arith.constant 0 : index
    %c0_19 = arith.constant 0 : index
    %25 = vector.load %arg8[%c0_18, %c0_19] : memref<512x512xbf16, #tpu.memory_space<vmem>>, vector<512x512xbf16>
    %cst_20 = arith.constant dense<0.000000e+00> : vector<8x512xf32>
    %26 = tpu.matmul %24, %25, %cst_20 {dimension_numbers = #tpu.dot_dimension_numbers<[1], [0], [0], [1], [0, 0, 1, 1], [], []>} : vector<8x512xbf16>, vector<512x512xbf16>, vector<8x512xf32> -> vector<8x512xf32>
    %c0_21 = arith.constant 0 : index
    %c0_22 = arith.constant 0 : index
    %27 = vector.load %arg9[%c0_21, %c0_22] : memref<1x512xf32, #tpu.memory_space<vmem>>, vector<1x512xf32>
    %28 = vector.broadcast %27 : vector<1x512xf32> to vector<8x512xf32>
    %29 = arith.addf %26, %28 : vector<8x512xf32>
    %cst_23 = arith.constant 0.000000e+00 : f32
    %30 = vector.broadcast %cst_23 : f32 to vector<8x512xf32>
    %31 = arith.maximumf %29, %30 : vector<8x512xf32>
    %32 = arith.truncf %31 : vector<8x512xf32> to vector<8x512xbf16>
    %c0_24 = arith.constant 0 : index
    %c0_25 = arith.constant 0 : index
    %33 = vector.load %arg10[%c0_24, %c0_25] : memref<512x128xbf16, #tpu.memory_space<vmem>>, vector<512x128xbf16>
    %cst_26 = arith.constant dense<0.000000e+00> : vector<8x128xf32>
    %34 = tpu.matmul %32, %33, %cst_26 {dimension_numbers = #tpu.dot_dimension_numbers<[1], [0], [0], [1], [0, 0, 1, 1], [], []>} : vector<8x512xbf16>, vector<512x128xbf16>, vector<8x128xf32> -> vector<8x128xf32>
    %c0_27 = arith.constant 0 : index
    %c0_28 = arith.constant 0 : index
    %35 = vector.load %arg11[%c0_27, %c0_28] : memref<1x128xf32, #tpu.memory_space<vmem>>, vector<1x128xf32>
    %36 = vector.broadcast %35 : vector<1x128xf32> to vector<8x128xf32>
    %37 = arith.addf %34, %36 : vector<8x128xf32>
    %38 = tpu.iota {dimensions = array<i32: 1>} : vector<8x128xi32>
    %c4_i32 = arith.constant 4 : i32
    %39 = vector.broadcast %c4_i32 : i32 to vector<8x128xi32>
    %40 = arith.cmpi sge, %38, %39 : vector<8x128xi32>
    %cst_29 = arith.constant -2.000000e+01 : f32
    %cst_30 = arith.constant 2.000000e+00 : f32
    %41 = vector.broadcast %cst_29 : f32 to vector<8x128xf32>
    %42 = arith.maximumf %41, %37 : vector<8x128xf32>
    %43 = vector.broadcast %cst_30 : f32 to vector<8x128xf32>
    %44 = arith.minimumf %43, %42 : vector<8x128xf32>
    %45 = arith.select %40, %44, %37 : vector<8x128xi1>, vector<8x128xf32>
    %c0_31 = arith.constant 0 : index
    %c0_32 = arith.constant 0 : index
    %46 = vector.load %arg12[%c0_31, %c0_32] : memref<8x128xf32, #tpu.memory_space<vmem>>, vector<8x128xf32>
    tpu.vector_store %arg12[%c0_31, %c0_32], %45 {strides = array<i32>} : memref<8x128xf32, #tpu.memory_space<vmem>>, vector<8x128xf32>,
    return
  }
  func.func @transform_0(%arg0: i32) -> (i32, i32) {
    %c0_i32 = arith.constant 0 : i32
    %c0_i32_0 = arith.constant 0 : i32
    return %arg0, %c0_i32 : i32, i32
  }
  func.func @transform_1(%arg0: i32) -> (i32, i32) {
    %c0_i32 = arith.constant 0 : i32
    %c0_i32_0 = arith.constant 0 : i32
    %c0_i32_1 = arith.constant 0 : i32
    return %c0_i32, %c0_i32_0 : i32, i32
  }
  func.func @transform_2(%arg0: i32) -> (i32, i32) {
    %c0_i32 = arith.constant 0 : i32
    %c0_i32_0 = arith.constant 0 : i32
    %c0_i32_1 = arith.constant 0 : i32
    return %c0_i32, %c0_i32_0 : i32, i32
  }
  func.func @transform_3(%arg0: i32) -> (i32, i32) {
    %c0_i32 = arith.constant 0 : i32
    %c0_i32_0 = arith.constant 0 : i32
    %c0_i32_1 = arith.constant 0 : i32
    return %c0_i32, %c0_i32_0 : i32, i32
  }
  func.func @transform_4(%arg0: i32) -> (i32, i32) {
    %c0_i32 = arith.constant 0 : i32
    %c0_i32_0 = arith.constant 0 : i32
    %c0_i32_1 = arith.constant 0 : i32
    return %c0_i32, %c0_i32_0 : i32, i32
  }
  func.func @transform_5(%arg0: i32) -> (i32, i32) {
    %c0_i32 = arith.constant 0 : i32
    %c0_i32_0 = arith.constant 0 : i32
    %c0_i32_1 = arith.constant 0 : i32
    return %c0_i32, %c0_i32_0 : i32, i32
  }
  func.func @transform_6(%arg0: i32) -> (i32, i32) {
    %c0_i32 = arith.constant 0 : i32
    %c0_i32_0 = arith.constant 0 : i32
    %c0_i32_1 = arith.constant 0 : i32
    return %c0_i32, %c0_i32_0 : i32, i32
  }
  func.func @transform_7(%arg0: i32) -> (i32, i32) {
    %c0_i32 = arith.constant 0 : i32
    %c0_i32_0 = arith.constant 0 : i32
    %c0_i32_1 = arith.constant 0 : i32
    return %c0_i32, %c0_i32_0 : i32, i32
  }
  func.func @transform_8(%arg0: i32) -> (i32, i32) {
    %c0_i32 = arith.constant 0 : i32
    %c0_i32_0 = arith.constant 0 : i32
    %c0_i32_1 = arith.constant 0 : i32
    return %c0_i32, %c0_i32_0 : i32, i32
  }
  func.func @transform_9(%arg0: i32) -> (i32, i32) {
    %c0_i32 = arith.constant 0 : i32
    %c0_i32_0 = arith.constant 0 : i32
    %c0_i32_1 = arith.constant 0 : i32
    return %c0_i32, %c0_i32_0 : i32, i32
  }
  func.func @transform_10(%arg0: i32) -> (i32, i32) {
    %c0_i32 = arith.constant 0 : i32
    %c0_i32_0 = arith.constant 0 : i32
    %c0_i32_1 = arith.constant 0 : i32
    return %c0_i32, %c0_i32_0 : i32, i32
  }
  func.func @transform_11(%arg0: i32) -> (i32, i32) {
    %c0_i32 = arith.constant 0 : i32
    %c0_i32_0 = arith.constant 0 : i32
    return %arg0, %c0_i32 : i32, i32
  }
}

</mosaic_0001>

<llo_original>
// kernel: tpu_custom_call.1
$region0: #{tpu_custom_call.1}
  #allocation0 [shape = 'u32[]', space=smem, size = 0x4, offset = 0x4, fixed_abs, tag = 'smem constant byte address 0x4 - core index']
  #allocation1 [shape = 'u32[144,128]{1,0:T(1,128)}', space=vmem, size = 0x12000, scoped, tag = 'internal scratch']
  %s0 = inlined_call_operand.hbm [shape: bf16[8,16], index: 0, kind: input, shape index: {}]
  %s1 = inlined_call_operand.hbm [shape: bf16[16,512], index: 1, kind: input, shape index: {}]
  %s2 = inlined_call_operand.vmem [shape: f32[1,512], index: 2, kind: input, shape index: {}]
  %s3 = inlined_call_operand.hbm [shape: bf16[512,512], index: 3, kind: input, shape index: {}]
  %s4 = inlined_call_operand.vmem [shape: f32[1,512], index: 4, kind: input, shape index: {}]
  %s5 = inlined_call_operand.hbm [shape: bf16[512,512], index: 5, kind: input, shape index: {}]
  %s6 = inlined_call_operand.vmem [shape: f32[1,512], index: 6, kind: input, shape index: {}]
  %s7 = inlined_call_operand.hbm [shape: bf16[512,512], index: 7, kind: input, shape index: {}]
  %s8 = inlined_call_operand.vmem [shape: f32[1,512], index: 8, kind: input, shape index: {}]
  %s9 = inlined_call_operand.hbm [shape: bf16[512,128], index: 9, kind: input, shape index: {}]
  %s10 = inlined_call_operand.vmem [shape: f32[1,128], index: 10, kind: input, shape index: {}]
  %s11 = inlined_call_operand.hbm [shape: f32[8,128], index: 11, kind: output, shape index: {}]
  %s12 = sld [smem:[#allocation0]]
  $region78: #{tpu_custom_call.1} parent=0
    _
  %s14 = ssub.s32 1, %s12
  %s15 = scalar_select 0, %s14, %s12
  $region1: #{tpu_custom_call.1} parent=0
    #allocation2 [shape = 'u8[2048]{0}', space=vmem, size = 0x800, scoped, tag = 'input window, operand 0, single buffered']
    #allocation3 [shape = 's32[1]{0}', space=sflag, size = 0x4, scoped, tag = 'scoped memory for tpu_custom_call.1']
    #allocation4 [shape = 's32[1]{0}', space=sflag, size = 0x4, scoped, tag = 'scoped memory for tpu_custom_call.1']
    #allocation5 [shape = 'u8[16384]{0}', space=vmem, size = 0x4000, scoped, tag = 'input window, operand 1, single buffered']
    #allocation6 [shape = 's32[1]{0}', space=sflag, size = 0x4, scoped, tag = 'scoped memory for tpu_custom_call.1']
    #allocation7 [shape = 'u8[524288]{0}', space=vmem, size = 0x80000, scoped, tag = 'input window, operand 3, single buffered']
    #allocation8 [shape = 'u8[524288]{0}', space=vmem, size = 0x80000, scoped, tag = 'input window, operand 5, single buffered']
    #allocation9 [shape = 's32[1]{0}', space=sflag, size = 0x4, scoped, tag = 'scoped memory for tpu_custom_call.1']
    #allocation10 [shape = 'u8[524288]{0}', space=vmem, size = 0x80000, scoped, tag = 'input window, operand 7, single buffered']
    #allocation11 [shape = 'u8[131072]{0}', space=vmem, size = 0x20000, scoped, tag = 'input window, operand 9, single buffered']
    #allocation12 [shape = 's32[1]{0}', space=sflag, size = 0x4, scoped, tag = 'scoped memory for tpu_custom_call.1']
    #allocation13 [shape = 'u8[4096]{0}', space=vmem, size = 0x1000, scoped, tag = 'output window, operand 0, single buffered']
    %16 = vsyncpa [#allocation3], 0
    %17 = vsyncpa [#allocation6], 0
    %18 = vsyncpa [#allocation9], 0
    %19 = vsyncpa [#allocation12], 0
    %20 = vsyncpa [#allocation4], 0
    // Predicated region
    $region2: #{tpu_custom_call.1} parent=1 // pred_check
      _
    $region3: #{tpu_custom_call.1} parent=1 // pred_check_branch
      %22 = sbr.rel (0) target = $region5
    $region4: #{tpu_custom_call.1} parent=1 // pred_region
      %s24 = ssub.s32 64, 64
      %25 = vsyncadd [#allocation3], %s24
      %s27 = sshll.u32 [#allocation2], 4
      %s28 = int_to_ptr.vmem [resolvable:$true] %s27
      %30 = dma.hbm_to_vmem [thread:$0]  %s0, 64, %s28, [#allocation3]
    $region5: #{tpu_custom_call.1} parent=1 // pred_fallthru
      _
    // Predicated region
    $region6: #{tpu_custom_call.1} parent=1 // pred_check
      _
    $region7: #{tpu_custom_call.1} parent=1 // pred_check_branch
      %32 = sbr.rel (0) target = $region9
    $region8: #{tpu_custom_call.1} parent=1 // pred_region
      %s34 = ssub.s32 512, 512
      %35 = vsyncadd [#allocation6], %s34
      %s36 = sshll.u32 [#allocation5], 4
      %s37 = int_to_ptr.vmem [resolvable:$true] %s36
      %42 = dma.hbm_to_vmem [thread:$0]  %s1, 512, %s37, [#allocation6], 256, 256, 16
    $region9: #{tpu_custom_call.1} parent=1 // pred_fallthru
      _
    // Predicated region
    $region10: #{tpu_custom_call.1} parent=1 // pred_check
      _
    $region11: #{tpu_custom_call.1} parent=1 // pred_check_branch
      %44 = sbr.rel (0) target = $region13
    $region12: #{tpu_custom_call.1} parent=1 // pred_region
      _
    $region13: #{tpu_custom_call.1} parent=1 // pred_fallthru
      _
    // Predicated region
    $region14: #{tpu_custom_call.1} parent=1 // pred_check
      _
    $region15: #{tpu_custom_call.1} parent=1 // pred_check_branch
      %46 = sbr.rel (0) target = $region17
    $region16: #{tpu_custom_call.1} parent=1 // pred_region
      %s48 = ssub.s32 16384, 16384
      %49 = vsyncadd [#allocation6], %s48
      %s50 = sshll.u32 [#allocation7], 4
      %s51 = int_to_ptr.vmem [resolvable:$true] %s50
      %56 = dma.hbm_to_vmem [thread:$0]  %s3, 16384, %s51, [#allocation6], 256, 256, 16
    $region17: #{tpu_custom_call.1} parent=1 // pred_fallthru
      _
    // Predicated region
    $region18: #{tpu_custom_call.1} parent=1 // pred_check
      _
    $region19: #{tpu_custom_call.1} parent=1 // pred_check_branch
      %58 = sbr.rel (0) target = $region21
    $region20: #{tpu_custom_call.1} parent=1 // pred_region
      _
    $region21: #{tpu_custom_call.1} parent=1 // pred_fallthru
      _
    // Predicated region
    $region22: #{tpu_custom_call.1} parent=1 // pred_check
      _
    $region23: #{tpu_custom_call.1} parent=1 // pred_check_branch
      %60 = sbr.rel (0) target = $region25
    $region24: #{tpu_custom_call.1} parent=1 // pred_region
      %s62 = ssub.s32 16384, 16384
      %63 = vsyncadd [#allocation9], %s62
      %s64 = sshll.u32 [#allocation8], 4
      %s65 = int_to_ptr.vmem [resolvable:$true] %s64
      %70 = dma.hbm_to_vmem [thread:$0]  %s5, 16384, %s65, [#allocation9], 256, 256, 16
    $region25: #{tpu_custom_call.1} parent=1 // pred_fallthru
      _
    // Predicated region
    $region26: #{tpu_custom_call.1} parent=1 // pred_check
      _
    $region27: #{tpu_custom_call.1} parent=1 // pred_check_branch
      %72 = sbr.rel (0) target = $region29
    $region28: #{tpu_custom_call.1} parent=1 // pred_region
      _
    $region29: #{tpu_custom_call.1} parent=1 // pred_fallthru
      _
    // Predicated region
    $region30: #{tpu_custom_call.1} parent=1 // pred_check
      _
    $region31: #{tpu_custom_call.1} parent=1 // pred_check_branch
      %74 = sbr.rel (0) target = $region33
    $region32: #{tpu_custom_call.1} parent=1 // pred_region
      %s76 = ssub.s32 16384, 16384
      %77 = vsyncadd [#allocation9], %s76
      %s78 = sshll.u32 [#allocation10], 4
      %s79 = int_to_ptr.vmem [resolvable:$true] %s78
      %84 = dma.hbm_to_vmem [thread:$0]  %s7, 16384, %s79, [#allocation9], 256, 256, 16
    $region33: #{tpu_custom_call.1} parent=1 // pred_fallthru
      _
    // Predicated region
    $region34: #{tpu_custom_call.1} parent=1 // pred_check
      _
    $region35: #{tpu_custom_call.1} parent=1 // pred_check_branch
      %86 = sbr.rel (0) target = $region37
    $region36: #{tpu_custom_call.1} parent=1 // pred_region
      _
    $region37: #{tpu_custom_call.1} parent=1 // pred_fallthru
      _
    // Predicated region
    $region38: #{tpu_custom_call.1} parent=1 // pred_check
      _
    $region39: #{tpu_custom_call.1} parent=1 // pred_check_branch
      %88 = sbr.rel (0) target = $region41
    $region40: #{tpu_custom_call.1} parent=1 // pred_region
      %s90 = ssub.s32 4096, 4096
      %91 = vsyncadd [#allocation12], %s90
      %s92 = sshll.u32 [#allocation11], 4
      %s93 = int_to_ptr.vmem [resolvable:$true] %s92
      %98 = dma.hbm_to_vmem [thread:$0]  %s9, 4096, %s93, [#allocation12], 64, 64, 4
    $region41: #{tpu_custom_call.1} parent=1 // pred_fallthru
      _
    // Predicated region
    $region42: #{tpu_custom_call.1} parent=1 // pred_check
      _
    $region43: #{tpu_custom_call.1} parent=1 // pred_check_branch
      %100 = sbr.rel (0) target = $region45
    $region44: #{tpu_custom_call.1} parent=1 // pred_region
      _
    $region45: #{tpu_custom_call.1} parent=1 // pred_fallthru
      _
    // Predicated region
    $region46: #{tpu_custom_call.1} parent=1 // pred_check
      _
    $region47: #{tpu_custom_call.1} parent=1 // pred_check_branch
      %102 = sbr.rel (0) target = $region49
    $region48: #{tpu_custom_call.1} parent=1 // pred_region
      %103 = dma.done [#allocation3], 64
    $region49: #{tpu_custom_call.1} parent=1 // pred_fallthru
      _
    // Predicated region
    $region50: #{tpu_custom_call.1} parent=1 // pred_check
      _
    $region51: #{tpu_custom_call.1} parent=1 // pred_check_branch
      %105 = sbr.rel (0) target = $region53
    $region52: #{tpu_custom_call.1} parent=1 // pred_region
      %106 = dma.done [#allocation6], 512
    $region53: #{tpu_custom_call.1} parent=1 // pred_fallthru
      _
    // Predicated region
    $region54: #{tpu_custom_call.1} parent=1 // pred_check
      _
    $region55: #{tpu_custom_call.1} parent=1 // pred_check_branch
      %108 = sbr.rel (0) target = $region57
    $region56: #{tpu_custom_call.1} parent=1 // pred_region
      %109 = dma.done [#allocation6], 16384
    $region57: #{tpu_custom_call.1} parent=1 // pred_fallthru
      _
    // Predicated region
    $region58: #{tpu_custom_call.1} parent=1 // pred_check
      _
    $region59: #{tpu_custom_call.1} parent=1 // pred_check_branch
      %111 = sbr.rel (0) target = $region61
    $region60: #{tpu_custom_call.1} parent=1 // pred_region
      %112 = dma.done [#allocation9], 16384
    $region61: #{tpu_custom_call.1} parent=1 // pred_fallthru
      _
    // Predicated region
    $region62: #{tpu_custom_call.1} parent=1 // pred_check
      _
    $region63: #{tpu_custom_call.1} parent=1 // pred_check_branch
      %114 = sbr.rel (0) target = $region65
    $region64: #{tpu_custom_call.1} parent=1 // pred_region
      %115 = dma.done [#allocation9], 16384
    $region65: #{tpu_custom_call.1} parent=1 // pred_fallthru
      _
    // Predicated region
    $region66: #{tpu_custom_call.1} parent=1 // pred_check
      _
    $region67: #{tpu_custom_call.1} parent=1 // pred_check_branch
      %117 = sbr.rel (0) target = $region69
    $region68: #{tpu_custom_call.1} parent=1 // pred_region
      %118 = dma.done [#allocation12], 4096
    $region69: #{tpu_custom_call.1} parent=1 // pred_fallthru
      _
    %v120 = vld [vmem:[#allocation2] sm:$0xf]
    %v121 = vld [vmem:[#allocation5] sm:$0xff]
    %v122 = vld [vmem:[#allocation5 + $0x8] sm:$0xff]
    %v123 = vld [vmem:[#allocation5 + $0x10] sm:$0xff]
    %v124 = vld [vmem:[#allocation5 + $0x18] sm:$0xff]
    %v125 = vld [vmem:[%s2] sm:$0xf]
    %v127 = vlaneseq
    %v128 = vshrl.u32 %v127, 7
    %v129 = vsub.s32 0, %v128
    %v130 = vrot.slane %v125, %v129
    %v131 = vlaneseq
    %v132 = vshrl.u32 %v131, 7
    %v133 = vsub.s32 1, %v132
    %v134 = vrot.slane %v125, %v133
    %v135 = vlaneseq
    %v136 = vshrl.u32 %v135, 7
    %v137 = vsub.s32 2, %v136
    %v138 = vrot.slane %v125, %v137
    %v139 = vlaneseq
    %v140 = vshrl.u32 %v139, 7
    %v141 = vsub.s32 3, %v140
    %v142 = vrot.slane %v125, %v141
    %v151 = vunpack.c.l.b16 %v121
    %v152 = vunpack.c.h.b16 %v121
    %v153 = vunpack.c.l.b16 %v122
    %v154 = vunpack.c.h.b16 %v122
    %v155 = vunpack.c.l.b16 %v123
    %v156 = vunpack.c.h.b16 %v123
    %v157 = vunpack.c.l.b16 %v124
    %v158 = vunpack.c.h.b16 %v124
    %v159 = vpack.c.b16 %v155, %v151
    %v160 = vpack.c.b16 %v156, %v152
    %v161 = vpack.c.b16 %v157, %v153
    %v162 = vpack.c.b16 %v158, %v154
    %vm167 = vcmask 130048
    %v169 = vsel %vm167, %v120, 0
    %171 = vmatprep.subr.bf16.mxu0 %v160
    %172 = vmatpush1.bf16.msra.mxu0 %v159
    %173 = vmatprep.subr.bf16.mxu0 0
    %174 = vmatpush1.bf16.msra.mxu0 0
    %175 = vmatprep.subr.bf16.mxu0 0
    %176 = vmatpush1.bf16.msra.mxu0 0
    %177 = vmatprep.subr.bf16.mxu0 0
    %178 = vmatpush1.bf16.msra.mxu0 0
    %179 = vmatprep.subr.bf16.mxu0 0
    %180 = vmatpush1.bf16.msra.mxu0 0
    %181 = vmatprep.subr.bf16.mxu0 0
    %182 = vmatpush1.bf16.msra.mxu0 0
    %183 = vmatprep.subr.bf16.mxu0 0
    %184 = vmatpush1.bf16.msra.mxu0 0
    %185 = vmatprep.subr.bf16.mxu0 0
    %186 = vmatpush1.bf16.msra.mxu0 0
    %187 = vmatprep.subr.bf16.mxu0 0
    %188 = vmatpush1.bf16.msra.mxu0 0
    %189 = vmatprep.subr.bf16.mxu0 0
    %190 = vmatpush1.bf16.msra.mxu0 0
    %191 = vmatprep.subr.bf16.mxu0 0
    %192 = vmatpush1.bf16.msra.mxu0 0
    %193 = vmatprep.subr.bf16.mxu0 0
    %194 = vmatpush1.bf16.msra.mxu0 0
    %195 = vmatprep.subr.bf16.mxu0 0
    %196 = vmatpush1.bf16.msra.mxu0 0
    %197 = vmatprep.subr.bf16.mxu0 0
    %198 = vmatpush1.bf16.msra.mxu0 0
    %199 = vmatprep.subr.bf16.mxu0 0
    %200 = vmatpush1.bf16.msra.mxu0 0
    %201 = vmatprep.subr.bf16.mxu0 0
    %202 = vmatpush1.bf16.msra.mxu0 0
    %203 = vmatprep.mubr.bf16.mxu0 0
    %204 = vmatmul.mubr.bf16.gmra.mrb[0].mxu0 %v169
    %v205 = vpop.f32.mrb[0].mxu0
    %v206 = vadd.f32 %v130, %v205
    %v207 = vpop.f32.mrb[0].mxu0
    %v208 = vadd.f32 %v134, %v207
    %v209 = vpop.f32.mrb[0].mxu0
    %v210 = vpop.f32.mrb[0].mxu0
    %211 = vdwg.mxu0
    %212 = vmatprep.subr.bf16.mxu0 %v162
    %213 = vmatpush1.bf16.msra.mxu0 %v161
    %214 = vmatprep.subr.bf16.mxu0 0
    %215 = vmatpush1.bf16.msra.mxu0 0
    %216 = vmatprep.subr.bf16.mxu0 0
    %217 = vmatpush1.bf16.msra.mxu0 0
    %218 = vmatprep.subr.bf16.mxu0 0
    %219 = vmatpush1.bf16.msra.mxu0 0
    %220 = vmatprep.subr.bf16.mxu0 0
    %221 = vmatpush1.bf16.msra.mxu0 0
    %222 = vmatprep.subr.bf16.mxu0 0
    %223 = vmatpush1.bf16.msra.mxu0 0
    %224 = vmatprep.subr.bf16.mxu0 0
    %225 = vmatpush1.bf16.msra.mxu0 0
    %226 = vmatprep.subr.bf16.mxu0 0
    %227 = vmatpush1.bf16.msra.mxu0 0
    %228 = vmatprep.subr.bf16.mxu0 0
    %229 = vmatpush1.bf16.msra.mxu0 0
    %230 = vmatprep.subr.bf16.mxu0 0
    %231 = vmatpush1.bf16.msra.mxu0 0
    %232 = vmatprep.subr.bf16.mxu0 0
    %233 = vmatpush1.bf16.msra.mxu0 0
    %234 = vmatprep.subr.bf16.mxu0 0
    %235 = vmatpush1.bf16.msra.mxu0 0
    %236 = vmatprep.subr.bf16.mxu0 0
    %237 = vmatpush1.bf16.msra.mxu0 0
    %238 = vmatprep.subr.bf16.mxu0 0
    %239 = vmatpush1.bf16.msra.mxu0 0
    %240 = vmatprep.subr.bf16.mxu0 0
    %241 = vmatpush1.bf16.msra.mxu0 0
    %242 = vmatprep.subr.bf16.mxu0 0
    %243 = vmatpush1.bf16.msra.mxu0 0
    %244 = vmatprep.mubr.bf16.mxu0 0
    %245 = vmatmul.mubr.bf16.gmra.mrb[0].mxu0 %v169
    %v246 = vpop.f32.mrb[0].mxu0
    %v247 = vadd.f32 %v138, %v246
    %v248 = vpop.f32.mrb[0].mxu0
    %v249 = vadd.f32 %v142, %v248
    %v250 = vpop.f32.mrb[0].mxu0
    %v251 = vpop.f32.mrb[0].mxu0
    %252 = vdwg.mxu0
    %v253 = vmax.f32 %v206, 0.0
    %v254 = vmax.f32 %v208, 0.0
    %v255 = vmax.f32 %v247, 0.0
    %v256 = vmax.f32 %v249, 0.0
    %v257 = vpack.c.bf16 %v253, %v253
    %v258 = vpack.c.bf16 %v254, %v254
    %v259 = vpack.c.bf16 %v255, %v255
    %v260 = vpack.c.bf16 %v256, %v256
    %v261 = vld [vmem:[#allocation7] sm:$0xff]
    %v262 = vld [vmem:[#allocation7 + $0x8] sm:$0xff]
    %v263 = vld [vmem:[#allocation7 + $0x10] sm:$0xff]
    %v264 = vld [vmem:[#allocation7 + $0x18] sm:$0xff]
    %v265 = vld [vmem:[#allocation7 + $0x20] sm:$0xff]
    %v266 = vld [vmem:[#allocation7 + $0x28] sm:$0xff]
    %v267 = vld [vmem:[#allocation7 + $0x30] sm:$0xff]
    %v268 = vld [vmem:[#allocation7 + $0x38] sm:$0xff]
    %v269 = vld [vmem:[#allocation7 + $0x40] sm:$0xff]
    %v270 = vld [vmem:[#allocation7 + $0x48] sm:$0xff]
    %v271 = vld [vmem:[#allocation7 + $0x50] sm:$0xff]
    %v272 = vld [vmem:[#allocation7 + $0x58] sm:$0xff]
    %v273 = vld [vmem:[#allocation7 + $0x60] sm:$0xff]
    %v274 = vld [vmem:[#allocation7 + $0x68] sm:$0xff]
    %v275 = vld [vmem:[#allocation7 + $0x70] sm:$0xff]
    %v276 = vld [vmem:[#allocation7 + $0x78] sm:$0xff]
    %v277 = vld [vmem:[#allocation7 + $0x80] sm:$0xff]
    %v278 = vld [vmem:[#allocation7 + $0x88] sm:$0xff]
    %v279 = vld [vmem:[#allocation7 + $0x90] sm:$0xff]
    %v280 = vld [vmem:[#allocation7 + $0x98] sm:$0xff]
    %v281 = vld [vmem:[#allocation7 + $0xa0] sm:$0xff]
    %v282 = vld [vmem:[#allocation7 + $0xa8] sm:$0xff]
    %v283 = vld [vmem:[#allocation7 + $0xb0] sm:$0xff]
    %v284 = vld [vmem:[#allocation7 + $0xb8] sm:$0xff]
    %v285 = vld [vmem:[#allocation7 + $0xc0] sm:$0xff]
    %v286 = vld [vmem:[#allocation7 + $0xc8] sm:$0xff]
    %v287 = vld [vmem:[#allocation7 + $0xd0] sm:$0xff]
    %v288 = vld [vmem:[#allocation7 + $0xd8] sm:$0xff]
    %v289 = vld [vmem:[#allocation7 + $0xe0] sm:$0xff]
    %v290 = vld [vmem:[#allocation7 + $0xe8] sm:$0xff]
    %v291 = vld [vmem:[#allocation7 + $0xf0] sm:$0xff]
    %v292 = vld [vmem:[#allocation7 + $0xf8] sm:$0xff]
    %v293 = vld [vmem:[#allocation7 + $0x100] sm:$0xff]
    %v294 = vld [vmem:[#allocation7 + $0x108] sm:$0xff]
    %v295 = vld [vmem:[#allocation7 + $0x110] sm:$0xff]
    %v296 = vld [vmem:[#allocation7 + $0x118] sm:$0xff]
    %v297 = vld [vmem:[#allocation7 + $0x120] sm:$0xff]
    %v298 = vld [vmem:[#allocation7 + $0x128] sm:$0xff]
    %v299 = vld [vmem:[#allocation7 + $0x130] sm:$0xff]
    %v300 = vld [vmem:[#allocation7 + $0x138] sm:$0xff]
    %v301 = vld [vmem:[#allocation7 + $0x140] sm:$0xff]
    %v302 = vld [vmem:[#allocation7 + $0x148] sm:$0xff]
    %v303 = vld [vmem:[#allocation7 + $0x150] sm:$0xff]
    %v304 = vld [vmem:[#allocation7 + $0x158] sm:$0xff]
    %v305 = vld [vmem:[#allocation7 + $0x160] sm:$0xff]
    %v306 = vld [vmem:[#allocation7 + $0x168] sm:$0xff]
    %v307 = vld [vmem:[#allocation7 + $0x170] sm:$0xff]
    %v308 = vld [vmem:[#allocation7 + $0x178] sm:$0xff]
    %v309 = vld [vmem:[#allocation7 + $0x180] sm:$0xff]
    %v310 = vld [vmem:[#allocation7 + $0x188] sm:$0xff]
    %v311 = vld [vmem:[#allocation7 + $0x190] sm:$0xff]
    %v312 = vld [vmem:[#allocation7 + $0x198] sm:$0xff]
    %v313 = vld [vmem:[#allocation7 + $0x1a0] sm:$0xff]
    %v314 = vld [vmem:[#allocation7 + $0x1a8] sm:$0xff]
    %v315 = vld [vmem:[#allocation7 + $0x1b0] sm:$0xff]
    %v316 = vld [vmem:[#allocation7 + $0x1b8] sm:$0xff]
    %v317 = vld [vmem:[#allocation7 + $0x1c0] sm:$0xff]
    %v318 = vld [vmem:[#allocation7 + $0x1c8] sm:$0xff]
    %v319 = vld [vmem:[#allocation7 + $0x1d0] sm:$0xff]
    %v320 = vld [vmem:[#allocation7 + $0x1d8] sm:$0xff]
    %v321 = vld [vmem:[#allocation7 + $0x1e0] sm:$0xff]
    %v322 = vld [vmem:[#allocation7 + $0x1e8] sm:$0xff]
    %v323 = vld [vmem:[#allocation7 + $0x1f0] sm:$0xff]
    %v324 = vld [vmem:[#allocation7 + $0x1f8] sm:$0xff]
    %v325 = vld [vmem:[#allocation7 + $0x200] sm:$0xff]
    %v326 = vld [vmem:[#allocation7 + $0x208] sm:$0xff]
    %v327 = vld [vmem:[#allocation7 + $0x210] sm:$0xff]
    %v328 = vld [vmem:[#allocation7 + $0x218] sm:$0xff]
    %v329 = vld [vmem:[#allocation7 + $0x220] sm:$0xff]
    %v330 = vld [vmem:[#allocation7 + $0x228] sm:$0xff]
    %v331 = vld [vmem:[#allocation7 + $0x230] sm:$0xff]
    %v332 = vld [vmem:[#allocation7 + $0x238] sm:$0xff]
    %v333 = vld [vmem:[#allocation7 + $0x240] sm:$0xff]
    %v334 = vld [vmem:[#allocation7 + $0x248] sm:$0xff]
    %v335 = vld [vmem:[#allocation7 + $0x250] sm:$0xff]
    %v336 = vld [vmem:[#allocation7 + $0x258] sm:$0xff]
    %v337 = vld [vmem:[#allocation7 + $0x260] sm:$0xff]
    %v338 = vld [vmem:[#allocation7 + $0x268] sm:$0xff]
    %v339 = vld [vmem:[#allocation7 + $0x270] sm:$0xff]
    %v340 = vld [vmem:[#allocation7 + $0x278] sm:$0xff]
    %v341 = vld [vmem:[#allocation7 + $0x280] sm:$0xff]
    %v342 = vld [vmem:[#allocation7 + $0x288] sm:$0xff]
    %v343 = vld [vmem:[#allocation7 + $0x290] sm:$0xff]
    %v344 = vld [vmem:[#allocation7 + $0x298] sm:$0xff]
    %v345 = vld [vmem:[#allocation7 + $0x2a0] sm:$0xff]
    %v346 = vld [vmem:[#allocation7 + $0x2a8] sm:$0xff]
    %v347 = vld [vmem:[#allocation7 + $0x2b0] sm:$0xff]
    %v348 = vld [vmem:[#allocation7 + $0x2b8] sm:$0xff]
    %v349 = vld [vmem:[#allocation7 + $0x2c0] sm:$0xff]
    %v350 = vld [vmem:[#allocation7 + $0x2c8] sm:$0xff]
    %v351 = vld [vmem:[#allocation7 + $0x2d0] sm:$0xff]
    %v352 = vld [vmem:[#allocation7 + $0x2d8] sm:$0xff]
    %v353 = vld [vmem:[#allocation7 + $0x2e0] sm:$0xff]
    %v354 = vld [vmem:[#allocation7 + $0x2e8] sm:$0xff]
    %v355 = vld [vmem:[#allocation7 + $0x2f0] sm:$0xff]
    %v356 = vld [vmem:[#allocation7 + $0x2f8] sm:$0xff]
    %v357 = vld [vmem:[#allocation7 + $0x300] sm:$0xff]
    %v358 = vld [vmem:[#allocation7 + $0x308] sm:$0xff]
    %v359 = vld [vmem:[#allocation7 + $0x310] sm:$0xff]
    %v360 = vld [vmem:[#allocation7 + $0x318] sm:$0xff]
    %v361 = vld [vmem:[#allocation7 + $0x320] sm:$0xff]
    %v362 = vld [vmem:[#allocation7 + $0x328] sm:$0xff]
    %v363 = vld [vmem:[#allocation7 + $0x330] sm:$0xff]
    %v364 = vld [vmem:[#allocation7 + $0x338] sm:$0xff]
    %v365 = vld [vmem:[#allocation7 + $0x340] sm:$0xff]
    %v366 = vld [vmem:[#allocation7 + $0x348] sm:$0xff]
    %v367 = vld [vmem:[#allocation7 + $0x350] sm:$0xff]
    %v368 = vld [vmem:[#allocation7 + $0x358] sm:$0xff]
    %v369 = vld [vmem:[#allocation7 + $0x360] sm:$0xff]
    %v370 = vld [vmem:[#allocation7 + $0x368] sm:$0xff]
    %v371 = vld [vmem:[#allocation7 + $0x370] sm:$0xff]
    %v372 = vld [vmem:[#allocation7 + $0x378] sm:$0xff]
    %v373 = vld [vmem:[#allocation7 + $0x380] sm:$0xff]
    %v374 = vld [vmem:[#allocation7 + $0x388] sm:$0xff]
    %v375 = vld [vmem:[#allocation7 + $0x390] sm:$0xff]
    %v376 = vld [vmem:[#allocation7 + $0x398] sm:$0xff]
    %v377 = vld [vmem:[#allocation7 + $0x3a0] sm:$0xff]
    %v378 = vld [vmem:[#allocation7 + $0x3a8] sm:$0xff]
    %v379 = vld [vmem:[#allocation7 + $0x3b0] sm:$0xff]
    %v380 = vld [vmem:[#allocation7 + $0x3b8] sm:$0xff]
    %v381 = vld [vmem:[#allocation7 + $0x3c0] sm:$0xff]
    %v382 = vld [vmem:[#allocation7 + $0x3c8] sm:$0xff]
    %v383 = vld [vmem:[#allocation7 + $0x3d0] sm:$0xff]
    %v384 = vld [vmem:[#allocation7 + $0x3d8] sm:$0xff]
    %v385 = vld [vmem:[#allocation7 + $0x3e0] sm:$0xff]
    %v386 = vld [vmem:[#allocation7 + $0x3e8] sm:$0xff]
    %v387 = vld [vmem:[#allocation7 + $0x3f0] sm:$0xff]
    %v388 = vld [vmem:[#allocation7 + $0x3f8] sm:$0xff]
    %v389 = vld [vmem:[%s4] sm:$0xf]
    %v391 = vlaneseq
    %v392 = vshrl.u32 %v391, 7
    %v393 = vsub.s32 0, %v392
    %v394 = vrot.slane %v389, %v393
    %v395 = vlaneseq
    %v396 = vshrl.u32 %v395, 7
    %v397 = vsub.s32 1, %v396
    %v398 = vrot.slane %v389, %v397
    %v399 = vlaneseq
    %v400 = vshrl.u32 %v399, 7
    %v401 = vsub.s32 2, %v400
    %v402 = vrot.slane %v389, %v401
    %v403 = vlaneseq
    %v404 = vshrl.u32 %v403, 7
    %v405 = vsub.s32 3, %v404
    %v406 = vrot.slane %v389, %v405
    %v539 = vunpack.c.l.b16 %v261
    %v540 = vunpack.c.h.b16 %v261
    %v541 = vunpack.c.l.b16 %v262
    %v542 = vunpack.c.h.b16 %v262
    %v543 = vunpack.c.l.b16 %v263
    %v544 = vunpack.c.h.b16 %v263
    %v545 = vunpack.c.l.b16 %v264
    %v546 = vunpack.c.h.b16 %v264
    %v547 = vunpack.c.l.b16 %v265
    %v548 = vunpack.c.h.b16 %v265
    %v549 = vunpack.c.l.b16 %v266
    %v550 = vunpack.c.h.b16 %v266
    %v551 = vunpack.c.l.b16 %v267
    %v552 = vunpack.c.h.b16 %v267
    %v553 = vunpack.c.l.b16 %v268
    %v554 = vunpack.c.h.b16 %v268
    %v555 = vunpack.c.l.b16 %v269
    %v556 = vunpack.c.h.b16 %v269
    %v557 = vunpack.c.l.b16 %v270
    %v558 = vunpack.c.h.b16 %v270
    %v559 = vunpack.c.l.b16 %v271
    %v560 = vunpack.c.h.b16 %v271
    %v561 = vunpack.c.l.b16 %v272
    %v562 = vunpack.c.h.b16 %v272
    %v563 = vunpack.c.l.b16 %v273
    %v564 = vunpack.c.h.b16 %v273
    %v565 = vunpack.c.l.b16 %v274
    %v566 = vunpack.c.h.b16 %v274
    %v567 = vunpack.c.l.b16 %v275
    %v568 = vunpack.c.h.b16 %v275
    %v569 = vunpack.c.l.b16 %v276
    %v570 = vunpack.c.h.b16 %v276
    %v571 = vunpack.c.l.b16 %v277
    %v572 = vunpack.c.h.b16 %v277
    %v573 = vunpack.c.l.b16 %v278
    %v574 = vunpack.c.h.b16 %v278
    %v575 = vunpack.c.l.b16 %v279
    %v576 = vunpack.c.h.b16 %v279
    %v577 = vunpack.c.l.b16 %v280
    %v578 = vunpack.c.h.b16 %v280
    %v579 = vunpack.c.l.b16 %v281
    %v580 = vunpack.c.h.b16 %v281
    %v581 = vunpack.c.l.b16 %v282
    %v582 = vunpack.c.h.b16 %v282
    %v583 = vunpack.c.l.b16 %v283
    %v584 = vunpack.c.h.b16 %v283
    %v585 = vunpack.c.l.b16 %v284
    %v586 = vunpack.c.h.b16 %v284
    %v587 = vunpack.c.l.b16 %v285
    %v588 = vunpack.c.h.b16 %v285
    %v589 = vunpack.c.l.b16 %v286
    %v590 = vunpack.c.h.b16 %v286
    %v591 = vunpack.c.l.b16 %v287
    %v592 = vunpack.c.h.b16 %v287
    %v593 = vunpack.c.l.b16 %v288
    %v594 = vunpack.c.h.b16 %v288
    %v595 = vunpack.c.l.b16 %v289
    %v596 = vunpack.c.h.b16 %v289
    %v597 = vunpack.c.l.b16 %v290
    %v598 = vunpack.c.h.b16 %v290
    %v599 = vunpack.c.l.b16 %v291
    %v600 = vunpack.c.h.b16 %v291
    %v601 = vunpack.c.l.b16 %v292
    %v602 = vunpack.c.h.b16 %v292
    %v603 = vunpack.c.l.b16 %v293
    %v604 = vunpack.c.h.b16 %v293
    %v605 = vunpack.c.l.b16 %v294
    %v606 = vunpack.c.h.b16 %v294
    %v607 = vunpack.c.l.b16 %v295
    %v608 = vunpack.c.h.b16 %v295
    %v609 = vunpack.c.l.b16 %v296
    %v610 = vunpack.c.h.b16 %v296
    %v611 = vunpack.c.l.b16 %v297
    %v612 = vunpack.c.h.b16 %v297
    %v613 = vunpack.c.l.b16 %v298
    %v614 = vunpack.c.h.b16 %v298
    %v615 = vunpack.c.l.b16 %v299
    %v616 = vunpack.c.h.b16 %v299
    %v617 = vunpack.c.l.b16 %v300
    %v618 = vunpack.c.h.b16 %v300
    %v619 = vunpack.c.l.b16 %v301
    %v620 = vunpack.c.h.b16 %v301
    %v621 = vunpack.c.l.b16 %v302
    %v622 = vunpack.c.h.b16 %v302
    %v623 = vunpack.c.l.b16 %v303
    %v624 = vunpack.c.h.b16 %v303
    %v625 = vunpack.c.l.b16 %v304
    %v626 = vunpack.c.h.b16 %v304
    %v627 = vunpack.c.l.b16 %v305
    %v628 = vunpack.c.h.b16 %v305
    %v629 = vunpack.c.l.b16 %v306
    %v630 = vunpack.c.h.b16 %v306
    %v631 = vunpack.c.l.b16 %v307
    %v632 = vunpack.c.h.b16 %v307
    %v633 = vunpack.c.l.b16 %v308
    %v634 = vunpack.c.h.b16 %v308
    %v635 = vunpack.c.l.b16 %v309
    %v636 = vunpack.c.h.b16 %v309
    %v637 = vunpack.c.l.b16 %v310
    %v638 = vunpack.c.h.b16 %v310
    %v639 = vunpack.c.l.b16 %v311
    %v640 = vunpack.c.h.b16 %v311
    %v641 = vunpack.c.l.b16 %v312
    %v642 = vunpack.c.h.b16 %v312
    %v643 = vunpack.c.l.b16 %v313
    %v644 = vunpack.c.h.b16 %v313
    %v645 = vunpack.c.l.b16 %v314
    %v646 = vunpack.c.h.b16 %v314
    %v647 = vunpack.c.l.b16 %v315
    %v648 = vunpack.c.h.b16 %v315
    %v649 = vunpack.c.l.b16 %v316
    %v650 = vunpack.c.h.b16 %v316
    %v651 = vunpack.c.l.b16 %v317
    %v652 = vunpack.c.h.b16 %v317
    %v653 = vunpack.c.l.b16 %v318
    %v654 = vunpack.c.h.b16 %v318
    %v655 = vunpack.c.l.b16 %v319
    %v656 = vunpack.c.h.b16 %v319
    %v657 = vunpack.c.l.b16 %v320
    %v658 = vunpack.c.h.b16 %v320
    %v659 = vunpack.c.l.b16 %v321
    %v660 = vunpack.c.h.b16 %v321
    %v661 = vunpack.c.l.b16 %v322
    %v662 = vunpack.c.h.b16 %v322
    %v663 = vunpack.c.l.b16 %v323
    %v664 = vunpack.c.h.b16 %v323
    %v665 = vunpack.c.l.b16 %v324
    %v666 = vunpack.c.h.b16 %v324
    %v667 = vunpack.c.l.b16 %v325
    %v668 = vunpack.c.h.b16 %v325
    %v669 = vunpack.c.l.b16 %v326
    %v670 = vunpack.c.h.b16 %v326
    %v671 = vunpack.c.l.b16 %v327
    %v672 = vunpack.c.h.b16 %v327
    %v673 = vunpack.c.l.b16 %v328
    %v674 = vunpack.c.h.b16 %v328
    %v675 = vunpack.c.l.b16 %v329
    %v676 = vunpack.c.h.b16 %v329
    %v677 = vunpack.c.l.b16 %v330
    %v678 = vunpack.c.h.b16 %v330
    %v679 = vunpack.c.l.b16 %v331
    %v680 = vunpack.c.h.b16 %v331
    %v681 = vunpack.c.l.b16 %v332
    %v682 = vunpack.c.h.b16 %v332
    %v683 = vunpack.c.l.b16 %v333
    %v684 = vunpack.c.h.b16 %v333
    %v685 = vunpack.c.l.b16 %v334
    %v686 = vunpack.c.h.b16 %v334
    %v687 = vunpack.c.l.b16 %v335
    %v688 = vunpack.c.h.b16 %v335
    %v689 = vunpack.c.l.b16 %v336
    %v690 = vunpack.c.h.b16 %v336
    %v691 = vunpack.c.l.b16 %v337
    %v692 = vunpack.c.h.b16 %v337
    %v693 = vunpack.c.l.b16 %v338
    %v694 = vunpack.c.h.b16 %v338
    %v695 = vunpack.c.l.b16 %v339
    %v696 = vunpack.c.h.b16 %v339
    %v697 = vunpack.c.l.b16 %v340
    %v698 = vunpack.c.h.b16 %v340
    %v699 = vunpack.c.l.b16 %v341
    %v700 = vunpack.c.h.b16 %v341
    %v701 = vunpack.c.l.b16 %v342
    %v702 = vunpack.c.h.b16 %v342
    %v703 = vunpack.c.l.b16 %v343
    %v704 = vunpack.c.h.b16 %v343
    %v705 = vunpack.c.l.b16 %v344
    %v706 = vunpack.c.h.b16 %v344
    %v707 = vunpack.c.l.b16 %v345
    %v708 = vunpack.c.h.b16 %v345
    %v709 = vunpack.c.l.b16 %v346
    %v710 = vunpack.c.h.b16 %v346
    %v711 = vunpack.c.l.b16 %v347
    %v712 = vunpack.c.h.b16 %v347
    %v713 = vunpack.c.l.b16 %v348
    %v714 = vunpack.c.h.b16 %v348
    %v715 = vunpack.c.l.b16 %v349
    %v716 = vunpack.c.h.b16 %v349
    %v717 = vunpack.c.l.b16 %v350
    %v718 = vunpack.c.h.b16 %v350
    %v719 = vunpack.c.l.b16 %v351
    %v720 = vunpack.c.h.b16 %v351
    %v721 = vunpack.c.l.b16 %v352
    %v722 = vunpack.c.h.b16 %v352
    %v723 = vunpack.c.l.b16 %v353
    %v724 = vunpack.c.h.b16 %v353
    %v725 = vunpack.c.l.b16 %v354
    %v726 = vunpack.c.h.b16 %v354
    %v727 = vunpack.c.l.b16 %v355
    %v728 = vunpack.c.h.b16 %v355
    %v729 = vunpack.c.l.b16 %v356
    %v730 = vunpack.c.h.b16 %v356
    %v731 = vunpack.c.l.b16 %v357
    %v732 = vunpack.c.h.b16 %v357
    %v733 = vunpack.c.l.b16 %v358
    %v734 = vunpack.c.h.b16 %v358
    %v735 = vunpack.c.l.b16 %v359
    %v736 = vunpack.c.h.b16 %v359
    %v737 = vunpack.c.l.b16 %v360
    %v738 = vunpack.c.h.b16 %v360
    %v739 = vunpack.c.l.b16 %v361
    %v740 = vunpack.c.h.b16 %v361
    %v741 = vunpack.c.l.b16 %v362
    %v742 = vunpack.c.h.b16 %v362
    %v743 = vunpack.c.l.b16 %v363
    %v744 = vunpack.c.h.b16 %v363
    %v745 = vunpack.c.l.b16 %v364
    %v746 = vunpack.c.h.b16 %v364
    %v747 = vunpack.c.l.b16 %v365
    %v748 = vunpack.c.h.b16 %v365
    %v749 = vunpack.c.l.b16 %v366
    %v750 = vunpack.c.h.b16 %v366
    %v751 = vunpack.c.l.b16 %v367
    %v752 = vunpack.c.h.b16 %v367
    %v753 = vunpack.c.l.b16 %v368
    %v754 = vunpack.c.h.b16 %v368
    %v755 = vunpack.c.l.b16 %v369
    %v756 = vunpack.c.h.b16 %v369
    %v757 = vunpack.c.l.b16 %v370
    %v758 = vunpack.c.h.b16 %v370
    %v759 = vunpack.c.l.b16 %v371
    %v760 = vunpack.c.h.b16 %v371
    %v761 = vunpack.c.l.b16 %v372
    %v762 = vunpack.c.h.b16 %v372
    %v763 = vunpack.c.l.b16 %v373
    %v764 = vunpack.c.h.b16 %v373
    %v765 = vunpack.c.l.b16 %v374
    %v766 = vunpack.c.h.b16 %v374
    %v767 = vunpack.c.l.b16 %v375
    %v768 = vunpack.c.h.b16 %v375
    %v769 = vunpack.c.l.b16 %v376
    %v770 = vunpack.c.h.b16 %v376
    %v771 = vunpack.c.l.b16 %v377
    %v772 = vunpack.c.h.b16 %v377
    %v773 = vunpack.c.l.b16 %v378
    %v774 = vunpack.c.h.b16 %v378
    %v775 = vunpack.c.l.b16 %v379
    %v776 = vunpack.c.h.b16 %v379
    %v777 = vunpack.c.l.b16 %v380
    %v778 = vunpack.c.h.b16 %v380
    %v779 = vunpack.c.l.b16 %v381
    %v780 = vunpack.c.h.b16 %v381
    %v781 = vunpack.c.l.b16 %v382
    %v782 = vunpack.c.h.b16 %v382
    %v783 = vunpack.c.l.b16 %v383
    %v784 = vunpack.c.h.b16 %v383
    %v785 = vunpack.c.l.b16 %v384
    %v786 = vunpack.c.h.b16 %v384
    %v787 = vunpack.c.l.b16 %v385
    %v788 = vunpack.c.h.b16 %v385
    %v789 = vunpack.c.l.b16 %v386
    %v790 = vunpack.c.h.b16 %v386
    %v791 = vunpack.c.l.b16 %v387
    %v792 = vunpack.c.h.b16 %v387
    %v793 = vunpack.c.l.b16 %v388
    %v794 = vunpack.c.h.b16 %v388
    %v795 = vpack.c.b16 %v543, %v539
    %v796 = vpack.c.b16 %v544, %v540
    %v797 = vpack.c.b16 %v545, %v541
    %v798 = vpack.c.b16 %v546, %v542
    %v799 = vpack.c.b16 %v551, %v547
    %v800 = vpack.c.b16 %v552, %v548
    %v801 = vpack.c.b16 %v553, %v549
    %v802 = vpack.c.b16 %v554, %v550
    %v803 = vpack.c.b16 %v559, %v555
    %v804 = vpack.c.b16 %v560, %v556
    %v805 = vpack.c.b16 %v561, %v557
    %v806 = vpack.c.b16 %v562, %v558
    %v807 = vpack.c.b16 %v567, %v563
    %v808 = vpack.c.b16 %v568, %v564
    %v809 = vpack.c.b16 %v569, %v565
    %v810 = vpack.c.b16 %v570, %v566
    %v811 = vpack.c.b16 %v575, %v571
    %v812 = vpack.c.b16 %v576, %v572
    %v813 = vpack.c.b16 %v577, %v573
    %v814 = vpack.c.b16 %v578, %v574
    %v815 = vpack.c.b16 %v583, %v579
    %v816 = vpack.c.b16 %v584, %v580
    %v817 = vpack.c.b16 %v585, %v581
    %v818 = vpack.c.b16 %v586, %v582
    %v819 = vpack.c.b16 %v591, %v587
    %v820 = vpack.c.b16 %v592, %v588
    %v821 = vpack.c.b16 %v593, %v589
    %v822 = vpack.c.b16 %v594, %v590
    %v823 = vpack.c.b16 %v599, %v595
    %v824 = vpack.c.b16 %v600, %v596
    %v825 = vpack.c.b16 %v601, %v597
    %v826 = vpack.c.b16 %v602, %v598
    %v827 = vpack.c.b16 %v607, %v603
    %v828 = vpack.c.b16 %v608, %v604
    %v829 = vpack.c.b16 %v609, %v605
    %v830 = vpack.c.b16 %v610, %v606
    %v831 = vpack.c.b16 %v615, %v611
    %v832 = vpack.c.b16 %v616, %v612
    %v833 = vpack.c.b16 %v617, %v613
    %v834 = vpack.c.b16 %v618, %v614
    %v835 = vpack.c.b16 %v623, %v619
    %v836 = vpack.c.b16 %v624, %v620
    %v837 = vpack.c.b16 %v625, %v621
    %v838 = vpack.c.b16 %v626, %v622
    %v839 = vpack.c.b16 %v631, %v627
    %v840 = vpack.c.b16 %v632, %v628
    %v841 = vpack.c.b16 %v633, %v629
    %v842 = vpack.c.b16 %v634, %v630
    %v843 = vpack.c.b16 %v639, %v635
    %v844 = vpack.c.b16 %v640, %v636
    %v845 = vpack.c.b16 %v641, %v637
    %v846 = vpack.c.b16 %v642, %v638
    %v847 = vpack.c.b16 %v647, %v643
    %v848 = vpack.c.b16 %v648, %v644
    %v849 = vpack.c.b16 %v649, %v645
    %v850 = vpack.c.b16 %v650, %v646
    %v851 = vpack.c.b16 %v655, %v651
    %v852 = vpack.c.b16 %v656, %v652
    %v853 = vpack.c.b16 %v657, %v653
    %v854 = vpack.c.b16 %v658, %v654
    %v855 = vpack.c.b16 %v663, %v659
    %v856 = vpack.c.b16 %v664, %v660
    %v857 = vpack.c.b16 %v665, %v661
    %v858 = vpack.c.b16 %v666, %v662
    %v859 = vpack.c.b16 %v671, %v667
    %v860 = vpack.c.b16 %v672, %v668
    %v861 = vpack.c.b16 %v673, %v669
    %v862 = vpack.c.b16 %v674, %v670
    %v863 = vpack.c.b16 %v679, %v675
    %v864 = vpack.c.b16 %v680, %v676
    %v865 = vpack.c.b16 %v681, %v677
    %v866 = vpack.c.b16 %v682, %v678
    %v867 = vpack.c.b16 %v687, %v683
    %v868 = vpack.c.b16 %v688, %v684
    %v869 = vpack.c.b16 %v689, %v685
    %v870 = vpack.c.b16 %v690, %v686
    %v871 = vpack.c.b16 %v695, %v691
    %v872 = vpack.c.b16 %v696, %v692
    %v873 = vpack.c.b16 %v697, %v693
    %v874 = vpack.c.b16 %v698, %v694
    %v875 = vpack.c.b16 %v703, %v699
    %v876 = vpack.c.b16 %v704, %v700
    %v877 = vpack.c.b16 %v705, %v701
    %v878 = vpack.c.b16 %v706, %v702
    %v879 = vpack.c.b16 %v711, %v707
    %v880 = vpack.c.b16 %v712, %v708
    %v881 = vpack.c.b16 %v713, %v709
    %v882 = vpack.c.b16 %v714, %v710
    %v883 = vpack.c.b16 %v719, %v715
    %v884 = vpack.c.b16 %v720, %v716
    %v885 = vpack.c.b16 %v721, %v717
    %v886 = vpack.c.b16 %v722, %v718
    %v887 = vpack.c.b16 %v727, %v723
    %v888 = vpack.c.b16 %v728, %v724
    %v889 = vpack.c.b16 %v729, %v725
    %v890 = vpack.c.b16 %v730, %v726
    %v891 = vpack.c.b16 %v735, %v731
    %v892 = vpack.c.b16 %v736, %v732
    %v893 = vpack.c.b16 %v737, %v733
    %v894 = vpack.c.b16 %v738, %v734
    %v895 = vpack.c.b16 %v743, %v739
    %v896 = vpack.c.b16 %v744, %v740
    %v897 = vpack.c.b16 %v745, %v741
    %v898 = vpack.c.b16 %v746, %v742
    %v899 = vpack.c.b16 %v751, %v747
    %v900 = vpack.c.b16 %v752, %v748
    %v901 = vpack.c.b16 %v753, %v749
    %v902 = vpack.c.b16 %v754, %v750
    %v903 = vpack.c.b16 %v759, %v755
    %v904 = vpack.c.b16 %v760, %v756
    %v905 = vpack.c.b16 %v761, %v757
    %v906 = vpack.c.b16 %v762, %v758
    %v907 = vpack.c.b16 %v767, %v763
    %v908 = vpack.c.b16 %v768, %v764
    %v909 = vpack.c.b16 %v769, %v765
    %v910 = vpack.c.b16 %v770, %v766
    %v911 = vpack.c.b16 %v775, %v771
    %v912 = vpack.c.b16 %v776, %v772
    %v913 = vpack.c.b16 %v777, %v773
    %v914 = vpack.c.b16 %v778, %v774
    %v915 = vpack.c.b16 %v783, %v779
    %v916 = vpack.c.b16 %v784, %v780
    %v917 = vpack.c.b16 %v785, %v781
    %v918 = vpack.c.b16 %v786, %v782
    %v919 = vpack.c.b16 %v791, %v787
    %v920 = vpack.c.b16 %v792, %v788
    %v921 = vpack.c.b16 %v793, %v789
    %v922 = vpack.c.b16 %v794, %v790
    %1051 = vmatprep.subr.bf16.mxu0 %v796
    %1052 = vmatpush1.bf16.msra.mxu0 %v795
    %1053 = vmatprep.subr.bf16.mxu0 %v800
    %1054 = vmatpush1.bf16.msra.mxu0 %v799
    %1055 = vmatprep.subr.bf16.mxu0 %v804
    %1056 = vmatpush1.bf16.msra.mxu0 %v803
    %1057 = vmatprep.subr.bf16.mxu0 %v808
    %1058 = vmatpush1.bf16.msra.mxu0 %v807
    %1059 = vmatprep.subr.bf16.mxu0 %v812
    %1060 = vmatpush1.bf16.msra.mxu0 %v811
    %1061 = vmatprep.subr.bf16.mxu0 %v816
    %1062 = vmatpush1.bf16.msra.mxu0 %v815
    %1063 = vmatprep.subr.bf16.mxu0 %v820
    %1064 = vmatpush1.bf16.msra.mxu0 %v819
    %1065 = vmatprep.subr.bf16.mxu0 %v824
    %1066 = vmatpush1.bf16.msra.mxu0 %v823
    %1067 = vmatprep.subr.bf16.mxu0 %v828
    %1068 = vmatpush1.bf16.msra.mxu0 %v827
    %1069 = vmatprep.subr.bf16.mxu0 %v832
    %1070 = vmatpush1.bf16.msra.mxu0 %v831
    %1071 = vmatprep.subr.bf16.mxu0 %v836
    %1072 = vmatpush1.bf16.msra.mxu0 %v835
    %1073 = vmatprep.subr.bf16.mxu0 %v840
    %1074 = vmatpush1.bf16.msra.mxu0 %v839
    %1075 = vmatprep.subr.bf16.mxu0 %v844
    %1076 = vmatpush1.bf16.msra.mxu0 %v843
    %1077 = vmatprep.subr.bf16.mxu0 %v848
    %1078 = vmatpush1.bf16.msra.mxu0 %v847
    %1079 = vmatprep.subr.bf16.mxu0 %v852
    %1080 = vmatpush1.bf16.msra.mxu0 %v851
    %1081 = vmatprep.subr.bf16.mxu0 %v856
    %1082 = vmatpush1.bf16.msra.mxu0 %v855
    %1083 = vmatprep.mubr.bf16.mxu0 %v258
    %1084 = vmatmul.mubr.bf16.gmra.mrb[0].mxu0 %v257
    %v1085 = vpop.f32.mrb[0].mxu0
    %v1086 = vadd.f32 %v394, %v1085
    %v1087 = vpop.f32.mrb[0].mxu0
    %v1088 = vadd.f32 %v398, %v1087
    %v1089 = vpop.f32.mrb[0].mxu0
    %v1090 = vpop.f32.mrb[0].mxu0
    %1091 = vdwg.mxu0
    %1092 = vmatprep.subr.bf16.mxu0 %v860
    %1093 = vmatpush1.bf16.msra.mxu0 %v859
    %1094 = vmatprep.subr.bf16.mxu0 %v864
    %1095 = vmatpush1.bf16.msra.mxu0 %v863
    %1096 = vmatprep.subr.bf16.mxu0 %v868
    %1097 = vmatpush1.bf16.msra.mxu0 %v867
    %1098 = vmatprep.subr.bf16.mxu0 %v872
    %1099 = vmatpush1.bf16.msra.mxu0 %v871
    %1100 = vmatprep.subr.bf16.mxu0 %v876
    %1101 = vmatpush1.bf16.msra.mxu0 %v875
    %1102 = vmatprep.subr.bf16.mxu0 %v880
    %1103 = vmatpush1.bf16.msra.mxu0 %v879
    %1104 = vmatprep.subr.bf16.mxu0 %v884
    %1105 = vmatpush1.bf16.msra.mxu0 %v883
    %1106 = vmatprep.subr.bf16.mxu0 %v888
    %1107 = vmatpush1.bf16.msra.mxu0 %v887
    %1108 = vmatprep.subr.bf16.mxu0 %v892
    %1109 = vmatpush1.bf16.msra.mxu0 %v891
    %1110 = vmatprep.subr.bf16.mxu0 %v896
    %1111 = vmatpush1.bf16.msra.mxu0 %v895
    %1112 = vmatprep.subr.bf16.mxu0 %v900
    %1113 = vmatpush1.bf16.msra.mxu0 %v899
    %1114 = vmatprep.subr.bf16.mxu0 %v904
    %1115 = vmatpush1.bf16.msra.mxu0 %v903
    %1116 = vmatprep.subr.bf16.mxu0 %v908
    %1117 = vmatpush1.bf16.msra.mxu0 %v907
    %1118 = vmatprep.subr.bf16.mxu0 %v912
    %1119 = vmatpush1.bf16.msra.mxu0 %v911
    %1120 = vmatprep.subr.bf16.mxu0 %v916
    %1121 = vmatpush1.bf16.msra.mxu0 %v915
    %1122 = vmatprep.subr.bf16.mxu0 %v920
    %1123 = vmatpush1.bf16.msra.mxu0 %v919
    %1124 = vmatprep.mubr.bf16.mxu0 %v260
    %1125 = vmatmul.mubr.bf16.gmra.mrb[0].mxu0 %v259
    %v1126 = vpop.f32.mrb[0].mxu0
    %v1127 = vadd.f32 %v1086, %v1126
    %v1128 = vpop.f32.mrb[0].mxu0
    %v1129 = vadd.f32 %v1088, %v1128
    %v1130 = vpop.f32.mrb[0].mxu0
    %v1131 = vpop.f32.mrb[0].mxu0
    %1132 = vdwg.mxu0
    %1133 = vmatprep.subr.bf16.mxu0 %v798
    %1134 = vmatpush1.bf16.msra.mxu0 %v797
    %1135 = vmatprep.subr.bf16.mxu0 %v802
    %1136 = vmatpush1.bf16.msra.mxu0 %v801
    %1137 = vmatprep.subr.bf16.mxu0 %v806
    %1138 = vmatpush1.bf16.msra.mxu0 %v805
    %1139 = vmatprep.subr.bf16.mxu0 %v810
    %1140 = vmatpush1.bf16.msra.mxu0 %v809
    %1141 = vmatprep.subr.bf16.mxu0 %v814
    %1142 = vmatpush1.bf16.msra.mxu0 %v813
    %1143 = vmatprep.subr.bf16.mxu0 %v818
    %1144 = vmatpush1.bf16.msra.mxu0 %v817
    %1145 = vmatprep.subr.bf16.mxu0 %v822
    %1146 = vmatpush1.bf16.msra.mxu0 %v821
    %1147 = vmatprep.subr.bf16.mxu0 %v826
    %1148 = vmatpush1.bf16.msra.mxu0 %v825
    %1149 = vmatprep.subr.bf16.mxu0 %v830
    %1150 = vmatpush1.bf16.msra.mxu0 %v829
    %1151 = vmatprep.subr.bf16.mxu0 %v834
    %1152 = vmatpush1.bf16.msra.mxu0 %v833
    %1153 = vmatprep.subr.bf16.mxu0 %v838
    %1154 = vmatpush1.bf16.msra.mxu0 %v837
    %1155 = vmatprep.subr.bf16.mxu0 %v842
    %1156 = vmatpush1.bf16.msra.mxu0 %v841
    %1157 = vmatprep.subr.bf16.mxu0 %v846
    %1158 = vmatpush1.bf16.msra.mxu0 %v845
    %1159 = vmatprep.subr.bf16.mxu0 %v850
    %1160 = vmatpush1.bf16.msra.mxu0 %v849
    %1161 = vmatprep.subr.bf16.mxu0 %v854
    %1162 = vmatpush1.bf16.msra.mxu0 %v853
    %1163 = vmatprep.subr.bf16.mxu0 %v858
    %1164 = vmatpush1.bf16.msra.mxu0 %v857
    %1165 = vmatprep.mubr.bf16.mxu0 %v258
    %1166 = vmatmul.mubr.bf16.gmra.mrb[0].mxu0 %v257
    %v1167 = vpop.f32.mrb[0].mxu0
    %v1168 = vadd.f32 %v402, %v1167
    %v1169 = vpop.f32.mrb[0].mxu0
    %v1170 = vadd.f32 %v406, %v1169
    %v1171 = vpop.f32.mrb[0].mxu0
    %v1172 = vpop.f32.mrb[0].mxu0
    %1173 = vdwg.mxu0
    %1174 = vmatprep.subr.bf16.mxu0 %v862
    %1175 = vmatpush1.bf16.msra.mxu0 %v861
    %1176 = vmatprep.subr.bf16.mxu0 %v866
    %1177 = vmatpush1.bf16.msra.mxu0 %v865
    %1178 = vmatprep.subr.bf16.mxu0 %v870
    %1179 = vmatpush1.bf16.msra.mxu0 %v869
    %1180 = vmatprep.subr.bf16.mxu0 %v874
    %1181 = vmatpush1.bf16.msra.mxu0 %v873
    %1182 = vmatprep.subr.bf16.mxu0 %v878
    %1183 = vmatpush1.bf16.msra.mxu0 %v877
    %1184 = vmatprep.subr.bf16.mxu0 %v882
    %1185 = vmatpush1.bf16.msra.mxu0 %v881
    %1186 = vmatprep.subr.bf16.mxu0 %v886
    %1187 = vmatpush1.bf16.msra.mxu0 %v885
    %1188 = vmatprep.subr.bf16.mxu0 %v890
    %1189 = vmatpush1.bf16.msra.mxu0 %v889
    %1190 = vmatprep.subr.bf16.mxu0 %v894
    %1191 = vmatpush1.bf16.msra.mxu0 %v893
    %1192 = vmatprep.subr.bf16.mxu0 %v898
    %1193 = vmatpush1.bf16.msra.mxu0 %v897
    %1194 = vmatprep.subr.bf16.mxu0 %v902
    %1195 = vmatpush1.bf16.msra.mxu0 %v901
    %1196 = vmatprep.subr.bf16.mxu0 %v906
    %1197 = vmatpush1.bf16.msra.mxu0 %v905
    %1198 = vmatprep.subr.bf16.mxu0 %v910
    %1199 = vmatpush1.bf16.msra.mxu0 %v909
    %1200 = vmatprep.subr.bf16.mxu0 %v914
    %1201 = vmatpush1.bf16.msra.mxu0 %v913
    %1202 = vmatprep.subr.bf16.mxu0 %v918
    %1203 = vmatpush1.bf16.msra.mxu0 %v917
    %1204 = vmatprep.subr.bf16.mxu0 %v922
    %1205 = vmatpush1.bf16.msra.mxu0 %v921
    %1206 = vmatprep.mubr.bf16.mxu0 %v260
    %1207 = vmatmul.mubr.bf16.gmra.mrb[0].mxu0 %v259
    %v1208 = vpop.f32.mrb[0].mxu0
    %v1209 = vadd.f32 %v1168, %v1208
    %v1210 = vpop.f32.mrb[0].mxu0
    %v1211 = vadd.f32 %v1170, %v1210
    %v1212 = vpop.f32.mrb[0].mxu0
    %v1213 = vpop.f32.mrb[0].mxu0
    %1214 = vdwg.mxu0
    %v1215 = vmax.f32 %v1127, 0.0
    %v1216 = vmax.f32 %v1129, 0.0
    %v1217 = vmax.f32 %v1209, 0.0
    %v1218 = vmax.f32 %v1211, 0.0
    %v1219 = vpack.c.bf16 %v1215, %v1215
    %v1220 = vpack.c.bf16 %v1216, %v1216
    %v1221 = vpack.c.bf16 %v1217, %v1217
    %v1222 = vpack.c.bf16 %v1218, %v1218
    %v1223 = vld [vmem:[#allocation8] sm:$0xff]
    %v1224 = vld [vmem:[#allocation8 + $0x8] sm:$0xff]
    %v1225 = vld [vmem:[#allocation8 + $0x10] sm:$0xff]
    %v1226 = vld [vmem:[#allocation8 + $0x18] sm:$0xff]
    %v1227 = vld [vmem:[#allocation8 + $0x20] sm:$0xff]
    %v1228 = vld [vmem:[#allocation8 + $0x28] sm:$0xff]
    %v1229 = vld [vmem:[#allocation8 + $0x30] sm:$0xff]
    %v1230 = vld [vmem:[#allocation8 + $0x38] sm:$0xff]
    %v1231 = vld [vmem:[#allocation8 + $0x40] sm:$0xff]
    %v1232 = vld [vmem:[#allocation8 + $0x48] sm:$0xff]
    %v1233 = vld [vmem:[#allocation8 + $0x50] sm:$0xff]
    %v1234 = vld [vmem:[#allocation8 + $0x58] sm:$0xff]
    %v1235 = vld [vmem:[#allocation8 + $0x60] sm:$0xff]
    %v1236 = vld [vmem:[#allocation8 + $0x68] sm:$0xff]
    %v1237 = vld [vmem:[#allocation8 + $0x70] sm:$0xff]
    %v1238 = vld [vmem:[#allocation8 + $0x78] sm:$0xff]
    %v1239 = vld [vmem:[#allocation8 + $0x80] sm:$0xff]
    %v1240 = vld [vmem:[#allocation8 + $0x88] sm:$0xff]
    %v1241 = vld [vmem:[#allocation8 + $0x90] sm:$0xff]
    %v1242 = vld [vmem:[#allocation8 + $0x98] sm:$0xff]
    %v1243 = vld [vmem:[#allocation8 + $0xa0] sm:$0xff]
    %v1244 = vld [vmem:[#allocation8 + $0xa8] sm:$0xff]
    %v1245 = vld [vmem:[#allocation8 + $0xb0] sm:$0xff]
    %v1246 = vld [vmem:[#allocation8 + $0xb8] sm:$0xff]
    %v1247 = vld [vmem:[#allocation8 + $0xc0] sm:$0xff]
    %v1248 = vld [vmem:[#allocation8 + $0xc8] sm:$0xff]
    %v1249 = vld [vmem:[#allocation8 + $0xd0] sm:$0xff]
    %v1250 = vld [vmem:[#allocation8 + $0xd8] sm:$0xff]
    %v1251 = vld [vmem:[#allocation8 + $0xe0] sm:$0xff]
    %v1252 = vld [vmem:[#allocation8 + $0xe8] sm:$0xff]
    %v1253 = vld [vmem:[#allocation8 + $0xf0] sm:$0xff]
    %v1254 = vld [vmem:[#allocation8 + $0xf8] sm:$0xff]
    %v1255 = vld [vmem:[#allocation8 + $0x100] sm:$0xff]
    %v1256 = vld [vmem:[#allocation8 + $0x108] sm:$0xff]
    %v1257 = vld [vmem:[#allocation8 + $0x110] sm:$0xff]
    %v1258 = vld [vmem:[#allocation8 + $0x118] sm:$0xff]
    %v1259 = vld [vmem:[#allocation8 + $0x120] sm:$0xff]
    %v1260 = vld [vmem:[#allocation8 + $0x128] sm:$0xff]
    %v1261 = vld [vmem:[#allocation8 + $0x130] sm:$0xff]
    %v1262 = vld [vmem:[#allocation8 + $0x138] sm:$0xff]
    %v1263 = vld [vmem:[#allocation8 + $0x140] sm:$0xff]
    %v1264 = vld [vmem:[#allocation8 + $0x148] sm:$0xff]
    %v1265 = vld [vmem:[#allocation8 + $0x150] sm:$0xff]
    %v1266 = vld [vmem:[#allocation8 + $0x158] sm:$0xff]
    %v1267 = vld [vmem:[#allocation8 + $0x160] sm:$0xff]
    %v1268 = vld [vmem:[#allocation8 + $0x168] sm:$0xff]
    %v1269 = vld [vmem:[#allocation8 + $0x170] sm:$0xff]
    %v1270 = vld [vmem:[#allocation8 + $0x178] sm:$0xff]
    %v1271 = vld [vmem:[#allocation8 + $0x180] sm:$0xff]
    %v1272 = vld [vmem:[#allocation8 + $0x188] sm:$0xff]
    %v1273 = vld [vmem:[#allocation8 + $0x190] sm:$0xff]
    %v1274 = vld [vmem:[#allocation8 + $0x198] sm:$0xff]
    %v1275 = vld [vmem:[#allocation8 + $0x1a0] sm:$0xff]
    %v1276 = vld [vmem:[#allocation8 + $0x1a8] sm:$0xff]
    %v1277 = vld [vmem:[#allocation8 + $0x1b0] sm:$0xff]
    %v1278 = vld [vmem:[#allocation8 + $0x1b8] sm:$0xff]
    %v1279 = vld [vmem:[#allocation8 + $0x1c0] sm:$0xff]
    %v1280 = vld [vmem:[#allocation8 + $0x1c8] sm:$0xff]
    %v1281 = vld [vmem:[#allocation8 + $0x1d0] sm:$0xff]
    %v1282 = vld [vmem:[#allocation8 + $0x1d8] sm:$0xff]
    %v1283 = vld [vmem:[#allocation8 + $0x1e0] sm:$0xff]
    %v1284 = vld [vmem:[#allocation8 + $0x1e8] sm:$0xff]
    %v1285 = vld [vmem:[#allocation8 + $0x1f0] sm:$0xff]
    %v1286 = vld [vmem:[#allocation8 + $0x1f8] sm:$0xff]
    %v1287 = vld [vmem:[#allocation8 + $0x200] sm:$0xff]
    %v1288 = vld [vmem:[#allocation8 + $0x208] sm:$0xff]
    %v1289 = vld [vmem:[#allocation8 + $0x210] sm:$0xff]
    %v1290 = vld [vmem:[#allocation8 + $0x218] sm:$0xff]
    %v1291 = vld [vmem:[#allocation8 + $0x220] sm:$0xff]
    %v1292 = vld [vmem:[#allocation8 + $0x228] sm:$0xff]
    %v1293 = vld [vmem:[#allocation8 + $0x230] sm:$0xff]
    %v1294 = vld [vmem:[#allocation8 + $0x238] sm:$0xff]
    %v1295 = vld [vmem:[#allocation8 + $0x240] sm:$0xff]
    %v1296 = vld [vmem:[#allocation8 + $0x248] sm:$0xff]
    %v1297 = vld [vmem:[#allocation8 + $0x250] sm:$0xff]
    %v1298 = vld [vmem:[#allocation8 + $0x258] sm:$0xff]
    %v1299 = vld [vmem:[#allocation8 + $0x260] sm:$0xff]
    %v1300 = vld [vmem:[#allocation8 + $0x268] sm:$0xff]
    %v1301 = vld [vmem:[#allocation8 + $0x270] sm:$0xff]
    %v1302 = vld [vmem:[#allocation8 + $0x278] sm:$0xff]
    %v1303 = vld [vmem:[#allocation8 + $0x280] sm:$0xff]
    %v1304 = vld [vmem:[#allocation8 + $0x288] sm:$0xff]
    %v1305 = vld [vmem:[#allocation8 + $0x290] sm:$0xff]
    %v1306 = vld [vmem:[#allocation8 + $0x298] sm:$0xff]
    %v1307 = vld [vmem:[#allocation8 + $0x2a0] sm:$0xff]
    %v1308 = vld [vmem:[#allocation8 + $0x2a8] sm:$0xff]
    %v1309 = vld [vmem:[#allocation8 + $0x2b0] sm:$0xff]
    %v1310 = vld [vmem:[#allocation8 + $0x2b8] sm:$0xff]
    %v1311 = vld [vmem:[#allocation8 + $0x2c0] sm:$0xff]
    %v1312 = vld [vmem:[#allocation8 + $0x2c8] sm:$0xff]
    %v1313 = vld [vmem:[#allocation8 + $0x2d0] sm:$0xff]
    %v1314 = vld [vmem:[#allocation8 + $0x2d8] sm:$0xff]
    %v1315 = vld [vmem:[#allocation8 + $0x2e0] sm:$0xff]
    %v1316 = vld [vmem:[#allocation8 + $0x2e8] sm:$0xff]
    %v1317 = vld [vmem:[#allocation8 + $0x2f0] sm:$0xff]
    %v1318 = vld [vmem:[#allocation8 + $0x2f8] sm:$0xff]
    %v1319 = vld [vmem:[#allocation8 + $0x300] sm:$0xff]
    %v1320 = vld [vmem:[#allocation8 + $0x308] sm:$0xff]
    %v1321 = vld [vmem:[#allocation8 + $0x310] sm:$0xff]
    %v1322 = vld [vmem:[#allocation8 + $0x318] sm:$0xff]
    %v1323 = vld [vmem:[#allocation8 + $0x320] sm:$0xff]
    %v1324 = vld [vmem:[#allocation8 + $0x328] sm:$0xff]
    %v1325 = vld [vmem:[#allocation8 + $0x330] sm:$0xff]
    %v1326 = vld [vmem:[#allocation8 + $0x338] sm:$0xff]
    %v1327 = vld [vmem:[#allocation8 + $0x340] sm:$0xff]
    %v1328 = vld [vmem:[#allocation8 + $0x348] sm:$0xff]
    %v1329 = vld [vmem:[#allocation8 + $0x350] sm:$0xff]
    %v1330 = vld [vmem:[#allocation8 + $0x358] sm:$0xff]
    %v1331 = vld [vmem:[#allocation8 + $0x360] sm:$0xff]
    %v1332 = vld [vmem:[#allocation8 + $0x368] sm:$0xff]
    %v1333 = vld [vmem:[#allocation8 + $0x370] sm:$0xff]
    %v1334 = vld [vmem:[#allocation8 + $0x378] sm:$0xff]
    %v1335 = vld [vmem:[#allocation8 + $0x380] sm:$0xff]
    %v1336 = vld [vmem:[#allocation8 + $0x388] sm:$0xff]
    %v1337 = vld [vmem:[#allocation8 + $0x390] sm:$0xff]
    %v1338 = vld [vmem:[#allocation8 + $0x398] sm:$0xff]
    %v1339 = vld [vmem:[#allocation8 + $0x3a0] sm:$0xff]
    %v1340 = vld [vmem:[#allocation8 + $0x3a8] sm:$0xff]
    %v1341 = vld [vmem:[#allocation8 + $0x3b0] sm:$0xff]
    %v1342 = vld [vmem:[#allocation8 + $0x3b8] sm:$0xff]
    %v1343 = vld [vmem:[#allocation8 + $0x3c0] sm:$0xff]
    %v1344 = vld [vmem:[#allocation8 + $0x3c8] sm:$0xff]
    %v1345 = vld [vmem:[#allocation8 + $0x3d0] sm:$0xff]
    %v1346 = vld [vmem:[#allocation8 + $0x3d8] sm:$0xff]
    %v1347 = vld [vmem:[#allocation8 + $0x3e0] sm:$0xff]
    %v1348 = vld [vmem:[#allocation8 + $0x3e8] sm:$0xff]
    %v1349 = vld [vmem:[#allocation8 + $0x3f0] sm:$0xff]
    %v1350 = vld [vmem:[#allocation8 + $0x3f8] sm:$0xff]
    %v1351 = vld [vmem:[%s6] sm:$0xf]
    %v1353 = vlaneseq
    %v1354 = vshrl.u32 %v1353, 7
    %v1355 = vsub.s32 0, %v1354
    %v1356 = vrot.slane %v1351, %v1355
    %v1357 = vlaneseq
    %v1358 = vshrl.u32 %v1357, 7
    %v1359 = vsub.s32 1, %v1358
    %v1360 = vrot.slane %v1351, %v1359
    %v1361 = vlaneseq
    %v1362 = vshrl.u32 %v1361, 7
    %v1363 = vsub.s32 2, %v1362
    %v1364 = vrot.slane %v1351, %v1363
    %v1365 = vlaneseq
    %v1366 = vshrl.u32 %v1365, 7
    %v1367 = vsub.s32 3, %v1366
    %v1368 = vrot.slane %v1351, %v1367
    %v1501 = vunpack.c.l.b16 %v1223
    %v1502 = vunpack.c.h.b16 %v1223
    %v1503 = vunpack.c.l.b16 %v1224
    %v1504 = vunpack.c.h.b16 %v1224
    %v1505 = vunpack.c.l.b16 %v1225
    %v1506 = vunpack.c.h.b16 %v1225
    %v1507 = vunpack.c.l.b16 %v1226
    %v1508 = vunpack.c.h.b16 %v1226
    %v1509 = vunpack.c.l.b16 %v1227
    %v1510 = vunpack.c.h.b16 %v1227
    %v1511 = vunpack.c.l.b16 %v1228
    %v1512 = vunpack.c.h.b16 %v1228
    %v1513 = vunpack.c.l.b16 %v1229
    %v1514 = vunpack.c.h.b16 %v1229
    %v1515 = vunpack.c.l.b16 %v1230
    %v1516 = vunpack.c.h.b16 %v1230
    %v1517 = vunpack.c.l.b16 %v1231
    %v1518 = vunpack.c.h.b16 %v1231
    %v1519 = vunpack.c.l.b16 %v1232
    %v1520 = vunpack.c.h.b16 %v1232
    %v1521 = vunpack.c.l.b16 %v1233
    %v1522 = vunpack.c.h.b16 %v1233
    %v1523 = vunpack.c.l.b16 %v1234
    %v1524 = vunpack.c.h.b16 %v1234
    %v1525 = vunpack.c.l.b16 %v1235
    %v1526 = vunpack.c.h.b16 %v1235
    %v1527 = vunpack.c.l.b16 %v1236
    %v1528 = vunpack.c.h.b16 %v1236
    %v1529 = vunpack.c.l.b16 %v1237
    %v1530 = vunpack.c.h.b16 %v1237
    %v1531 = vunpack.c.l.b16 %v1238
    %v1532 = vunpack.c.h.b16 %v1238
    %v1533 = vunpack.c.l.b16 %v1239
    %v1534 = vunpack.c.h.b16 %v1239
    %v1535 = vunpack.c.l.b16 %v1240
    %v1536 = vunpack.c.h.b16 %v1240
    %v1537 = vunpack.c.l.b16 %v1241
    %v1538 = vunpack.c.h.b16 %v1241
    %v1539 = vunpack.c.l.b16 %v1242
    %v1540 = vunpack.c.h.b16 %v1242
    %v1541 = vunpack.c.l.b16 %v1243
    %v1542 = vunpack.c.h.b16 %v1243
    %v1543 = vunpack.c.l.b16 %v1244
    %v1544 = vunpack.c.h.b16 %v1244
    %v1545 = vunpack.c.l.b16 %v1245
    %v1546 = vunpack.c.h.b16 %v1245
    %v1547 = vunpack.c.l.b16 %v1246
    %v1548 = vunpack.c.h.b16 %v1246
    %v1549 = vunpack.c.l.b16 %v1247
    %v1550 = vunpack.c.h.b16 %v1247
    %v1551 = vunpack.c.l.b16 %v1248
    %v1552 = vunpack.c.h.b16 %v1248
    %v1553 = vunpack.c.l.b16 %v1249
    %v1554 = vunpack.c.h.b16 %v1249
    %v1555 = vunpack.c.l.b16 %v1250
    %v1556 = vunpack.c.h.b16 %v1250
    %v1557 = vunpack.c.l.b16 %v1251
    %v1558 = vunpack.c.h.b16 %v1251
    %v1559 = vunpack.c.l.b16 %v1252
    %v1560 = vunpack.c.h.b16 %v1252
    %v1561 = vunpack.c.l.b16 %v1253
    %v1562 = vunpack.c.h.b16 %v1253
    %v1563 = vunpack.c.l.b16 %v1254
    %v1564 = vunpack.c.h.b16 %v1254
    %v1565 = vunpack.c.l.b16 %v1255
    %v1566 = vunpack.c.h.b16 %v1255
    %v1567 = vunpack.c.l.b16 %v1256
    %v1568 = vunpack.c.h.b16 %v1256
    %v1569 = vunpack.c.l.b16 %v1257
    %v1570 = vunpack.c.h.b16 %v1257
    %v1571 = vunpack.c.l.b16 %v1258
    %v1572 = vunpack.c.h.b16 %v1258
    %v1573 = vunpack.c.l.b16 %v1259
    %v1574 = vunpack.c.h.b16 %v1259
    %v1575 = vunpack.c.l.b16 %v1260
    %v1576 = vunpack.c.h.b16 %v1260
    %v1577 = vunpack.c.l.b16 %v1261
    %v1578 = vunpack.c.h.b16 %v1261
    %v1579 = vunpack.c.l.b16 %v1262
    %v1580 = vunpack.c.h.b16 %v1262
    %v1581 = vunpack.c.l.b16 %v1263
    %v1582 = vunpack.c.h.b16 %v1263
    %v1583 = vunpack.c.l.b16 %v1264
    %v1584 = vunpack.c.h.b16 %v1264
    %v1585 = vunpack.c.l.b16 %v1265
    %v1586 = vunpack.c.h.b16 %v1265
    %v1587 = vunpack.c.l.b16 %v1266
    %v1588 = vunpack.c.h.b16 %v1266
    %v1589 = vunpack.c.l.b16 %v1267
    %v1590 = vunpack.c.h.b16 %v1267
    %v1591 = vunpack.c.l.b16 %v1268
    %v1592 = vunpack.c.h.b16 %v1268
    %v1593 = vunpack.c.l.b16 %v1269
    %v1594 = vunpack.c.h.b16 %v1269
    %v1595 = vunpack.c.l.b16 %v1270
    %v1596 = vunpack.c.h.b16 %v1270
    %v1597 = vunpack.c.l.b16 %v1271
    %v1598 = vunpack.c.h.b16 %v1271
    %v1599 = vunpack.c.l.b16 %v1272
    %v1600 = vunpack.c.h.b16 %v1272
    %v1601 = vunpack.c.l.b16 %v1273
    %v1602 = vunpack.c.h.b16 %v1273
    %v1603 = vunpack.c.l.b16 %v1274
    %v1604 = vunpack.c.h.b16 %v1274
    %v1605 = vunpack.c.l.b16 %v1275
    %v1606 = vunpack.c.h.b16 %v1275
    %v1607 = vunpack.c.l.b16 %v1276
    %v1608 = vunpack.c.h.b16 %v1276
    %v1609 = vunpack.c.l.b16 %v1277
    %v1610 = vunpack.c.h.b16 %v1277
    %v1611 = vunpack.c.l.b16 %v1278
    %v1612 = vunpack.c.h.b16 %v1278
    %v1613 = vunpack.c.l.b16 %v1279
    %v1614 = vunpack.c.h.b16 %v1279
    %v1615 = vunpack.c.l.b16 %v1280
    %v1616 = vunpack.c.h.b16 %v1280
    %v1617 = vunpack.c.l.b16 %v1281
    %v1618 = vunpack.c.h.b16 %v1281
    %v1619 = vunpack.c.l.b16 %v1282
    %v1620 = vunpack.c.h.b16 %v1282
    %v1621 = vunpack.c.l.b16 %v1283
    %v1622 = vunpack.c.h.b16 %v1283
    %v1623 = vunpack.c.l.b16 %v1284
    %v1624 = vunpack.c.h.b16 %v1284
    %v1625 = vunpack.c.l.b16 %v1285
    %v1626 = vunpack.c.h.b16 %v1285
    %v1627 = vunpack.c.l.b16 %v1286
    %v1628 = vunpack.c.h.b16 %v1286
    %v1629 = vunpack.c.l.b16 %v1287
    %v1630 = vunpack.c.h.b16 %v1287
    %v1631 = vunpack.c.l.b16 %v1288
    %v1632 = vunpack.c.h.b16 %v1288
    %v1633 = vunpack.c.l.b16 %v1289
    %v1634 = vunpack.c.h.b16 %v1289
    %v1635 = vunpack.c.l.b16 %v1290
    %v1636 = vunpack.c.h.b16 %v1290
    %v1637 = vunpack.c.l.b16 %v1291
    %v1638 = vunpack.c.h.b16 %v1291
    %v1639 = vunpack.c.l.b16 %v1292
    %v1640 = vunpack.c.h.b16 %v1292
    %v1641 = vunpack.c.l.b16 %v1293
    %v1642 = vunpack.c.h.b16 %v1293
    %v1643 = vunpack.c.l.b16 %v1294
    %v1644 = vunpack.c.h.b16 %v1294
    %v1645 = vunpack.c.l.b16 %v1295
    %v1646 = vunpack.c.h.b16 %v1295
    %v1647 = vunpack.c.l.b16 %v1296
    %v1648 = vunpack.c.h.b16 %v1296
    %v1649 = vunpack.c.l.b16 %v1297
    %v1650 = vunpack.c.h.b16 %v1297
    %v1651 = vunpack.c.l.b16 %v1298
    %v1652 = vunpack.c.h.b16 %v1298
    %v1653 = vunpack.c.l.b16 %v1299
    %v1654 = vunpack.c.h.b16 %v1299
    %v1655 = vunpack.c.l.b16 %v1300
    %v1656 = vunpack.c.h.b16 %v1300
    %v1657 = vunpack.c.l.b16 %v1301
    %v1658 = vunpack.c.h.b16 %v1301
    %v1659 = vunpack.c.l.b16 %v1302
    %v1660 = vunpack.c.h.b16 %v1302
    %v1661 = vunpack.c.l.b16 %v1303
    %v1662 = vunpack.c.h.b16 %v1303
    %v1663 = vunpack.c.l.b16 %v1304
    %v1664 = vunpack.c.h.b16 %v1304
    %v1665 = vunpack.c.l.b16 %v1305
    %v1666 = vunpack.c.h.b16 %v1305
    %v1667 = vunpack.c.l.b16 %v1306
    %v1668 = vunpack.c.h.b16 %v1306
    %v1669 = vunpack.c.l.b16 %v1307
    %v1670 = vunpack.c.h.b16 %v1307
    %v1671 = vunpack.c.l.b16 %v1308
    %v1672 = vunpack.c.h.b16 %v1308
    %v1673 = vunpack.c.l.b16 %v1309
    %v1674 = vunpack.c.h.b16 %v1309
    %v1675 = vunpack.c.l.b16 %v1310
    %v1676 = vunpack.c.h.b16 %v1310
    %v1677 = vunpack.c.l.b16 %v1311
    %v1678 = vunpack.c.h.b16 %v1311
    %v1679 = vunpack.c.l.b16 %v1312
    %v1680 = vunpack.c.h.b16 %v1312
    %v1681 = vunpack.c.l.b16 %v1313
    %v1682 = vunpack.c.h.b16 %v1313
    %v1683 = vunpack.c.l.b16 %v1314
    %v1684 = vunpack.c.h.b16 %v1314
    %v1685 = vunpack.c.l.b16 %v1315
    %v1686 = vunpack.c.h.b16 %v1315
    %v1687 = vunpack.c.l.b16 %v1316
    %v1688 = vunpack.c.h.b16 %v1316
    %v1689 = vunpack.c.l.b16 %v1317
    %v1690 = vunpack.c.h.b16 %v1317
    %v1691 = vunpack.c.l.b16 %v1318
    %v1692 = vunpack.c.h.b16 %v1318
    %v1693 = vunpack.c.l.b16 %v1319
    %v1694 = vunpack.c.h.b16 %v1319
    %v1695 = vunpack.c.l.b16 %v1320
    %v1696 = vunpack.c.h.b16 %v1320
    %v1697 = vunpack.c.l.b16 %v1321
    %v1698 = vunpack.c.h.b16 %v1321
    %v1699 = vunpack.c.l.b16 %v1322
    %v1700 = vunpack.c.h.b16 %v1322
    %v1701 = vunpack.c.l.b16 %v1323
    %v1702 = vunpack.c.h.b16 %v1323
    %v1703 = vunpack.c.l.b16 %v1324
    %v1704 = vunpack.c.h.b16 %v1324
    %v1705 = vunpack.c.l.b16 %v1325
    %v1706 = vunpack.c.h.b16 %v1325
    %v1707 = vunpack.c.l.b16 %v1326
    %v1708 = vunpack.c.h.b16 %v1326
    %v1709 = vunpack.c.l.b16 %v1327
    %v1710 = vunpack.c.h.b16 %v1327
    %v1711 = vunpack.c.l.b16 %v1328
    %v1712 = vunpack.c.h.b16 %v1328
    %v1713 = vunpack.c.l.b16 %v1329
    %v1714 = vunpack.c.h.b16 %v1329
    %v1715 = vunpack.c.l.b16 %v1330
    %v1716 = vunpack.c.h.b16 %v1330
    %v1717 = vunpack.c.l.b16 %v1331
    %v1718 = vunpack.c.h.b16 %v1331
    %v1719 = vunpack.c.l.b16 %v1332
    %v1720 = vunpack.c.h.b16 %v1332
    %v1721 = vunpack.c.l.b16 %v1333
    %v1722 = vunpack.c.h.b16 %v1333
    %v1723 = vunpack.c.l.b16 %v1334
    %v1724 = vunpack.c.h.b16 %v1334
    %v1725 = vunpack.c.l.b16 %v1335
    %v1726 = vunpack.c.h.b16 %v1335
    %v1727 = vunpack.c.l.b16 %v1336
    %v1728 = vunpack.c.h.b16 %v1336
    %v1729 = vunpack.c.l.b16 %v1337
    %v1730 = vunpack.c.h.b16 %v1337
    %v1731 = vunpack.c.l.b16 %v1338
    %v1732 = vunpack.c.h.b16 %v1338
    %v1733 = vunpack.c.l.b16 %v1339
    %v1734 = vunpack.c.h.b16 %v1339
    %v1735 = vunpack.c.l.b16 %v1340
    %v1736 = vunpack.c.h.b16 %v1340
    %v1737 = vunpack.c.l.b16 %v1341
    %v1738 = vunpack.c.h.b16 %v1341
    %v1739 = vunpack.c.l.b16 %v1342
    %v1740 = vunpack.c.h.b16 %v1342
    %v1741 = vunpack.c.l.b16 %v1343
    %v1742 = vunpack.c.h.b16 %v1343
    %v1743 = vunpack.c.l.b16 %v1344
    %v1744 = vunpack.c.h.b16 %v1344
    %v1745 = vunpack.c.l.b16 %v1345
    %v1746 = vunpack.c.h.b16 %v1345
    %v1747 = vunpack.c.l.b16 %v1346
    %v1748 = vunpack.c.h.b16 %v1346
    %v1749 = vunpack.c.l.b16 %v1347
    %v1750 = vunpack.c.h.b16 %v1347
    %v1751 = vunpack.c.l.b16 %v1348
    %v1752 = vunpack.c.h.b16 %v1348
    %v1753 = vunpack.c.l.b16 %v1349
    %v1754 = vunpack.c.h.b16 %v1349
    %v1755 = vunpack.c.l.b16 %v1350
    %v1756 = vunpack.c.h.b16 %v1350
    %v1757 = vpack.c.b16 %v1505, %v1501
    %v1758 = vpack.c.b16 %v1506, %v1502
    %v1759 = vpack.c.b16 %v1507, %v1503
    %v1760 = vpack.c.b16 %v1508, %v1504
    %v1761 = vpack.c.b16 %v1513, %v1509
    %v1762 = vpack.c.b16 %v1514, %v1510
    %v1763 = vpack.c.b16 %v1515, %v1511
    %v1764 = vpack.c.b16 %v1516, %v1512
    %v1765 = vpack.c.b16 %v1521, %v1517
    %v1766 = vpack.c.b16 %v1522, %v1518
    %v1767 = vpack.c.b16 %v1523, %v1519
    %v1768 = vpack.c.b16 %v1524, %v1520
    %v1769 = vpack.c.b16 %v1529, %v1525
    %v1770 = vpack.c.b16 %v1530, %v1526
    %v1771 = vpack.c.b16 %v1531, %v1527
    %v1772 = vpack.c.b16 %v1532, %v1528
    %v1773 = vpack.c.b16 %v1537, %v1533
    %v1774 = vpack.c.b16 %v1538, %v1534
    %v1775 = vpack.c.b16 %v1539, %v1535
    %v1776 = vpack.c.b16 %v1540, %v1536
    %v1777 = vpack.c.b16 %v1545, %v1541
    %v1778 = vpack.c.b16 %v1546, %v1542
    %v1779 = vpack.c.b16 %v1547, %v1543
    %v1780 = vpack.c.b16 %v1548, %v1544
    %v1781 = vpack.c.b16 %v1553, %v1549
    %v1782 = vpack.c.b16 %v1554, %v1550
    %v1783 = vpack.c.b16 %v1555, %v1551
    %v1784 = vpack.c.b16 %v1556, %v1552
    %v1785 = vpack.c.b16 %v1561, %v1557
    %v1786 = vpack.c.b16 %v1562, %v1558
    %v1787 = vpack.c.b16 %v1563, %v1559
    %v1788 = vpack.c.b16 %v1564, %v1560
    %v1789 = vpack.c.b16 %v1569, %v1565
    %v1790 = vpack.c.b16 %v1570, %v1566
    %v1791 = vpack.c.b16 %v1571, %v1567
    %v1792 = vpack.c.b16 %v1572, %v1568
    %v1793 = vpack.c.b16 %v1577, %v1573
    %v1794 = vpack.c.b16 %v1578, %v1574
    %v1795 = vpack.c.b16 %v1579, %v1575
    %v1796 = vpack.c.b16 %v1580, %v1576
    %v1797 = vpack.c.b16 %v1585, %v1581
    %v1798 = vpack.c.b16 %v1586, %v1582
    %v1799 = vpack.c.b16 %v1587, %v1583
    %v1800 = vpack.c.b16 %v1588, %v1584
    %v1801 = vpack.c.b16 %v1593, %v1589
    %v1802 = vpack.c.b16 %v1594, %v1590
    %v1803 = vpack.c.b16 %v1595, %v1591
    %v1804 = vpack.c.b16 %v1596, %v1592
    %v1805 = vpack.c.b16 %v1601, %v1597
    %v1806 = vpack.c.b16 %v1602, %v1598
    %v1807 = vpack.c.b16 %v1603, %v1599
    %v1808 = vpack.c.b16 %v1604, %v1600
    %v1809 = vpack.c.b16 %v1609, %v1605
    %v1810 = vpack.c.b16 %v1610, %v1606
    %v1811 = vpack.c.b16 %v1611, %v1607
    %v1812 = vpack.c.b16 %v1612, %v1608
    %v1813 = vpack.c.b16 %v1617, %v1613
    %v1814 = vpack.c.b16 %v1618, %v1614
    %v1815 = vpack.c.b16 %v1619, %v1615
    %v1816 = vpack.c.b16 %v1620, %v1616
    %v1817 = vpack.c.b16 %v1625, %v1621
    %v1818 = vpack.c.b16 %v1626, %v1622
    %v1819 = vpack.c.b16 %v1627, %v1623
    %v1820 = vpack.c.b16 %v1628, %v1624
    %v1821 = vpack.c.b16 %v1633, %v1629
    %v1822 = vpack.c.b16 %v1634, %v1630
    %v1823 = vpack.c.b16 %v1635, %v1631
    %v1824 = vpack.c.b16 %v1636, %v1632
    %v1825 = vpack.c.b16 %v1641, %v1637
    %v1826 = vpack.c.b16 %v1642, %v1638
    %v1827 = vpack.c.b16 %v1643, %v1639
    %v1828 = vpack.c.b16 %v1644, %v1640
    %v1829 = vpack.c.b16 %v1649, %v1645
    %v1830 = vpack.c.b16 %v1650, %v1646
    %v1831 = vpack.c.b16 %v1651, %v1647
    %v1832 = vpack.c.b16 %v1652, %v1648
    %v1833 = vpack.c.b16 %v1657, %v1653
    %v1834 = vpack.c.b16 %v1658, %v1654
    %v1835 = vpack.c.b16 %v1659, %v1655
    %v1836 = vpack.c.b16 %v1660, %v1656
    %v1837 = vpack.c.b16 %v1665, %v1661
    %v1838 = vpack.c.b16 %v1666, %v1662
    %v1839 = vpack.c.b16 %v1667, %v1663
    %v1840 = vpack.c.b16 %v1668, %v1664
    %v1841 = vpack.c.b16 %v1673, %v1669
    %v1842 = vpack.c.b16 %v1674, %v1670
    %v1843 = vpack.c.b16 %v1675, %v1671
    %v1844 = vpack.c.b16 %v1676, %v1672
    %v1845 = vpack.c.b16 %v1681, %v1677
    %v1846 = vpack.c.b16 %v1682, %v1678
    %v1847 = vpack.c.b16 %v1683, %v1679
    %v1848 = vpack.c.b16 %v1684, %v1680
    %v1849 = vpack.c.b16 %v1689, %v1685
    %v1850 = vpack.c.b16 %v1690, %v1686
    %v1851 = vpack.c.b16 %v1691, %v1687
    %v1852 = vpack.c.b16 %v1692, %v1688
    %v1853 = vpack.c.b16 %v1697, %v1693
    %v1854 = vpack.c.b16 %v1698, %v1694
    %v1855 = vpack.c.b16 %v1699, %v1695
    %v1856 = vpack.c.b16 %v1700, %v1696
    %v1857 = vpack.c.b16 %v1705, %v1701
    %v1858 = vpack.c.b16 %v1706, %v1702
    %v1859 = vpack.c.b16 %v1707, %v1703
    %v1860 = vpack.c.b16 %v1708, %v1704
    %v1861 = vpack.c.b16 %v1713, %v1709
    %v1862 = vpack.c.b16 %v1714, %v1710
    %v1863 = vpack.c.b16 %v1715, %v1711
    %v1864 = vpack.c.b16 %v1716, %v1712
    %v1865 = vpack.c.b16 %v1721, %v1717
    %v1866 = vpack.c.b16 %v1722, %v1718
    %v1867 = vpack.c.b16 %v1723, %v1719
    %v1868 = vpack.c.b16 %v1724, %v1720
    %v1869 = vpack.c.b16 %v1729, %v1725
    %v1870 = vpack.c.b16 %v1730, %v1726
    %v1871 = vpack.c.b16 %v1731, %v1727
    %v1872 = vpack.c.b16 %v1732, %v1728
    %v1873 = vpack.c.b16 %v1737, %v1733
    %v1874 = vpack.c.b16 %v1738, %v1734
    %v1875 = vpack.c.b16 %v1739, %v1735
    %v1876 = vpack.c.b16 %v1740, %v1736
    %v1877 = vpack.c.b16 %v1745, %v1741
    %v1878 = vpack.c.b16 %v1746, %v1742
    %v1879 = vpack.c.b16 %v1747, %v1743
    %v1880 = vpack.c.b16 %v1748, %v1744
    %v1881 = vpack.c.b16 %v1753, %v1749
    %v1882 = vpack.c.b16 %v1754, %v1750
    %v1883 = vpack.c.b16 %v1755, %v1751
    %v1884 = vpack.c.b16 %v1756, %v1752
    %2013 = vmatprep.subr.bf16.mxu0 %v1758
    %2014 = vmatpush1.bf16.msra.mxu0 %v1757
    %2015 = vmatprep.subr.bf16.mxu0 %v1762
    %2016 = vmatpush1.bf16.msra.mxu0 %v1761
    %2017 = vmatprep.subr.bf16.mxu0 %v1766
    %2018 = vmatpush1.bf16.msra.mxu0 %v1765
    %2019 = vmatprep.subr.bf16.mxu0 %v1770
    %2020 = vmatpush1.bf16.msra.mxu0 %v1769
    %2021 = vmatprep.subr.bf16.mxu0 %v1774
    %2022 = vmatpush1.bf16.msra.mxu0 %v1773
    %2023 = vmatprep.subr.bf16.mxu0 %v1778
    %2024 = vmatpush1.bf16.msra.mxu0 %v1777
    %2025 = vmatprep.subr.bf16.mxu0 %v1782
    %2026 = vmatpush1.bf16.msra.mxu0 %v1781
    %2027 = vmatprep.subr.bf16.mxu0 %v1786
    %2028 = vmatpush1.bf16.msra.mxu0 %v1785
    %2029 = vmatprep.subr.bf16.mxu0 %v1790
    %2030 = vmatpush1.bf16.msra.mxu0 %v1789
    %2031 = vmatprep.subr.bf16.mxu0 %v1794
    %2032 = vmatpush1.bf16.msra.mxu0 %v1793
    %2033 = vmatprep.subr.bf16.mxu0 %v1798
    %2034 = vmatpush1.bf16.msra.mxu0 %v1797
    %2035 = vmatprep.subr.bf16.mxu0 %v1802
    %2036 = vmatpush1.bf16.msra.mxu0 %v1801
    %2037 = vmatprep.subr.bf16.mxu0 %v1806
    %2038 = vmatpush1.bf16.msra.mxu0 %v1805
    %2039 = vmatprep.subr.bf16.mxu0 %v1810
    %2040 = vmatpush1.bf16.msra.mxu0 %v1809
    %2041 = vmatprep.subr.bf16.mxu0 %v1814
    %2042 = vmatpush1.bf16.msra.mxu0 %v1813
    %2043 = vmatprep.subr.bf16.mxu0 %v1818
    %2044 = vmatpush1.bf16.msra.mxu0 %v1817
    %2045 = vmatprep.mubr.bf16.mxu0 %v1220
    %2046 = vmatmul.mubr.bf16.gmra.mrb[0].mxu0 %v1219
    %v2047 = vpop.f32.mrb[0].mxu0
    %v2048 = vadd.f32 %v1356, %v2047
    %v2049 = vpop.f32.mrb[0].mxu0
    %v2050 = vadd.f32 %v1360, %v2049
    %v2051 = vpop.f32.mrb[0].mxu0
    %v2052 = vpop.f32.mrb[0].mxu0
    %2053 = vdwg.mxu0
    %2054 = vmatprep.subr.bf16.mxu0 %v1822
    %2055 = vmatpush1.bf16.msra.mxu0 %v1821
    %2056 = vmatprep.subr.bf16.mxu0 %v1826
    %2057 = vmatpush1.bf16.msra.mxu0 %v1825
    %2058 = vmatprep.subr.bf16.mxu0 %v1830
    %2059 = vmatpush1.bf16.msra.mxu0 %v1829
    %2060 = vmatprep.subr.bf16.mxu0 %v1834
    %2061 = vmatpush1.bf16.msra.mxu0 %v1833
    %2062 = vmatprep.subr.bf16.mxu0 %v1838
    %2063 = vmatpush1.bf16.msra.mxu0 %v1837
    %2064 = vmatprep.subr.bf16.mxu0 %v1842
    %2065 = vmatpush1.bf16.msra.mxu0 %v1841
    %2066 = vmatprep.subr.bf16.mxu0 %v1846
    %2067 = vmatpush1.bf16.msra.mxu0 %v1845
    %2068 = vmatprep.subr.bf16.mxu0 %v1850
    %2069 = vmatpush1.bf16.msra.mxu0 %v1849
    %2070 = vmatprep.subr.bf16.mxu0 %v1854
    %2071 = vmatpush1.bf16.msra.mxu0 %v1853
    %2072 = vmatprep.subr.bf16.mxu0 %v1858
    %2073 = vmatpush1.bf16.msra.mxu0 %v1857
    %2074 = vmatprep.subr.bf16.mxu0 %v1862
    %2075 = vmatpush1.bf16.msra.mxu0 %v1861
    %2076 = vmatprep.subr.bf16.mxu0 %v1866
    %2077 = vmatpush1.bf16.msra.mxu0 %v1865
    %2078 = vmatprep.subr.bf16.mxu0 %v1870
    %2079 = vmatpush1.bf16.msra.mxu0 %v1869
    %2080 = vmatprep.subr.bf16.mxu0 %v1874
    %2081 = vmatpush1.bf16.msra.mxu0 %v1873
    %2082 = vmatprep.subr.bf16.mxu0 %v1878
    %2083 = vmatpush1.bf16.msra.mxu0 %v1877
    %2084 = vmatprep.subr.bf16.mxu0 %v1882
    %2085 = vmatpush1.bf16.msra.mxu0 %v1881
    %2086 = vmatprep.mubr.bf16.mxu0 %v1222
    %2087 = vmatmul.mubr.bf16.gmra.mrb[0].mxu0 %v1221
    %v2088 = vpop.f32.mrb[0].mxu0
    %v2089 = vadd.f32 %v2048, %v2088
    %v2090 = vpop.f32.mrb[0].mxu0
    %v2091 = vadd.f32 %v2050, %v2090
    %v2092 = vpop.f32.mrb[0].mxu0
    %v2093 = vpop.f32.mrb[0].mxu0
    %2094 = vdwg.mxu0
    %2095 = vmatprep.subr.bf16.mxu0 %v1760
    %2096 = vmatpush1.bf16.msra.mxu0 %v1759
    %2097 = vmatprep.subr.bf16.mxu0 %v1764
    %2098 = vmatpush1.bf16.msra.mxu0 %v1763
    %2099 = vmatprep.subr.bf16.mxu0 %v1768
    %2100 = vmatpush1.bf16.msra.mxu0 %v1767
    %2101 = vmatprep.subr.bf16.mxu0 %v1772
    %2102 = vmatpush1.bf16.msra.mxu0 %v1771
    %2103 = vmatprep.subr.bf16.mxu0 %v1776
    %2104 = vmatpush1.bf16.msra.mxu0 %v1775
    %2105 = vmatprep.subr.bf16.mxu0 %v1780
    %2106 = vmatpush1.bf16.msra.mxu0 %v1779
    %2107 = vmatprep.subr.bf16.mxu0 %v1784
    %2108 = vmatpush1.bf16.msra.mxu0 %v1783
    %2109 = vmatprep.subr.bf16.mxu0 %v1788
    %2110 = vmatpush1.bf16.msra.mxu0 %v1787
    %2111 = vmatprep.subr.bf16.mxu0 %v1792
    %2112 = vmatpush1.bf16.msra.mxu0 %v1791
    %2113 = vmatprep.subr.bf16.mxu0 %v1796
    %2114 = vmatpush1.bf16.msra.mxu0 %v1795
    %2115 = vmatprep.subr.bf16.mxu0 %v1800
    %2116 = vmatpush1.bf16.msra.mxu0 %v1799
    %2117 = vmatprep.subr.bf16.mxu0 %v1804
    %2118 = vmatpush1.bf16.msra.mxu0 %v1803
    %2119 = vmatprep.subr.bf16.mxu0 %v1808
    %2120 = vmatpush1.bf16.msra.mxu0 %v1807
    %2121 = vmatprep.subr.bf16.mxu0 %v1812
    %2122 = vmatpush1.bf16.msra.mxu0 %v1811
    %2123 = vmatprep.subr.bf16.mxu0 %v1816
    %2124 = vmatpush1.bf16.msra.mxu0 %v1815
    %2125 = vmatprep.subr.bf16.mxu0 %v1820
    %2126 = vmatpush1.bf16.msra.mxu0 %v1819
    %2127 = vmatprep.mubr.bf16.mxu0 %v1220
    %2128 = vmatmul.mubr.bf16.gmra.mrb[0].mxu0 %v1219
    %v2129 = vpop.f32.mrb[0].mxu0
    %v2130 = vadd.f32 %v1364, %v2129
    %v2131 = vpop.f32.mrb[0].mxu0
    %v2132 = vadd.f32 %v1368, %v2131
    %v2133 = vpop.f32.mrb[0].mxu0
    %v2134 = vpop.f32.mrb[0].mxu0
    %2135 = vdwg.mxu0
    %2136 = vmatprep.subr.bf16.mxu0 %v1824
    %2137 = vmatpush1.bf16.msra.mxu0 %v1823
    %2138 = vmatprep.subr.bf16.mxu0 %v1828
    %2139 = vmatpush1.bf16.msra.mxu0 %v1827
    %2140 = vmatprep.subr.bf16.mxu0 %v1832
    %2141 = vmatpush1.bf16.msra.mxu0 %v1831
    %2142 = vmatprep.subr.bf16.mxu0 %v1836
    %2143 = vmatpush1.bf16.msra.mxu0 %v1835
    %2144 = vmatprep.subr.bf16.mxu0 %v1840
    %2145 = vmatpush1.bf16.msra.mxu0 %v1839
    %2146 = vmatprep.subr.bf16.mxu0 %v1844
    %2147 = vmatpush1.bf16.msra.mxu0 %v1843
    %2148 = vmatprep.subr.bf16.mxu0 %v1848
    %2149 = vmatpush1.bf16.msra.mxu0 %v1847
    %2150 = vmatprep.subr.bf16.mxu0 %v1852
    %2151 = vmatpush1.bf16.msra.mxu0 %v1851
    %2152 = vmatprep.subr.bf16.mxu0 %v1856
    %2153 = vmatpush1.bf16.msra.mxu0 %v1855
    %2154 = vmatprep.subr.bf16.mxu0 %v1860
    %2155 = vmatpush1.bf16.msra.mxu0 %v1859
    %2156 = vmatprep.subr.bf16.mxu0 %v1864
    %2157 = vmatpush1.bf16.msra.mxu0 %v1863
    %2158 = vmatprep.subr.bf16.mxu0 %v1868
    %2159 = vmatpush1.bf16.msra.mxu0 %v1867
    %2160 = vmatprep.subr.bf16.mxu0 %v1872
    %2161 = vmatpush1.bf16.msra.mxu0 %v1871
    %2162 = vmatprep.subr.bf16.mxu0 %v1876
    %2163 = vmatpush1.bf16.msra.mxu0 %v1875
    %2164 = vmatprep.subr.bf16.mxu0 %v1880
    %2165 = vmatpush1.bf16.msra.mxu0 %v1879
    %2166 = vmatprep.subr.bf16.mxu0 %v1884
    %2167 = vmatpush1.bf16.msra.mxu0 %v1883
    %2168 = vmatprep.mubr.bf16.mxu0 %v1222
    %2169 = vmatmul.mubr.bf16.gmra.mrb[0].mxu0 %v1221
    %v2170 = vpop.f32.mrb[0].mxu0
    %v2171 = vadd.f32 %v2130, %v2170
    %v2172 = vpop.f32.mrb[0].mxu0
    %v2173 = vadd.f32 %v2132, %v2172
    %v2174 = vpop.f32.mrb[0].mxu0
    %v2175 = vpop.f32.mrb[0].mxu0
    %2176 = vdwg.mxu0
    %v2177 = vmax.f32 %v2089, 0.0
    %v2178 = vmax.f32 %v2091, 0.0
    %v2179 = vmax.f32 %v2171, 0.0
    %v2180 = vmax.f32 %v2173, 0.0
    %v2181 = vpack.c.bf16 %v2177, %v2177
    %v2182 = vpack.c.bf16 %v2178, %v2178
    %v2183 = vpack.c.bf16 %v2179, %v2179
    %v2184 = vpack.c.bf16 %v2180, %v2180
    %v2185 = vld [vmem:[#allocation10] sm:$0xff]
    %v2186 = vld [vmem:[#allocation10 + $0x8] sm:$0xff]
    %v2187 = vld [vmem:[#allocation10 + $0x10] sm:$0xff]
    %v2188 = vld [vmem:[#allocation10 + $0x18] sm:$0xff]
    %v2189 = vld [vmem:[#allocation10 + $0x20] sm:$0xff]
    %v2190 = vld [vmem:[#allocation10 + $0x28] sm:$0xff]
    %v2191 = vld [vmem:[#allocation10 + $0x30] sm:$0xff]
    %v2192 = vld [vmem:[#allocation10 + $0x38] sm:$0xff]
    %v2193 = vld [vmem:[#allocation10 + $0x40] sm:$0xff]
    %v2194 = vld [vmem:[#allocation10 + $0x48] sm:$0xff]
    %v2195 = vld [vmem:[#allocation10 + $0x50] sm:$0xff]
    %v2196 = vld [vmem:[#allocation10 + $0x58] sm:$0xff]
    %v2197 = vld [vmem:[#allocation10 + $0x60] sm:$0xff]
    %v2198 = vld [vmem:[#allocation10 + $0x68] sm:$0xff]
    %v2199 = vld [vmem:[#allocation10 + $0x70] sm:$0xff]
    %v2200 = vld [vmem:[#allocation10 + $0x78] sm:$0xff]
    %v2201 = vld [vmem:[#allocation10 + $0x80] sm:$0xff]
    %v2202 = vld [vmem:[#allocation10 + $0x88] sm:$0xff]
    %v2203 = vld [vmem:[#allocation10 + $0x90] sm:$0xff]
    %v2204 = vld [vmem:[#allocation10 + $0x98] sm:$0xff]
    %v2205 = vld [vmem:[#allocation10 + $0xa0] sm:$0xff]
    %v2206 = vld [vmem:[#allocation10 + $0xa8] sm:$0xff]
    %v2207 = vld [vmem:[#allocation10 + $0xb0] sm:$0xff]
    %v2208 = vld [vmem:[#allocation10 + $0xb8] sm:$0xff]
    %v2209 = vld [vmem:[#allocation10 + $0xc0] sm:$0xff]
    %v2210 = vld [vmem:[#allocation10 + $0xc8] sm:$0xff]
    %v2211 = vld [vmem:[#allocation10 + $0xd0] sm:$0xff]
    %v2212 = vld [vmem:[#allocation10 + $0xd8] sm:$0xff]
    %v2213 = vld [vmem:[#allocation10 + $0xe0] sm:$0xff]
    %v2214 = vld [vmem:[#allocation10 + $0xe8] sm:$0xff]
    %v2215 = vld [vmem:[#allocation10 + $0xf0] sm:$0xff]
    %v2216 = vld [vmem:[#allocation10 + $0xf8] sm:$0xff]
    %v2217 = vld [vmem:[#allocation10 + $0x100] sm:$0xff]
    %v2218 = vld [vmem:[#allocation10 + $0x108] sm:$0xff]
    %v2219 = vld [vmem:[#allocation10 + $0x110] sm:$0xff]
    %v2220 = vld [vmem:[#allocation10 + $0x118] sm:$0xff]
    %v2221 = vld [vmem:[#allocation10 + $0x120] sm:$0xff]
    %v2222 = vld [vmem:[#allocation10 + $0x128] sm:$0xff]
    %v2223 = vld [vmem:[#allocation10 + $0x130] sm:$0xff]
    %v2224 = vld [vmem:[#allocation10 + $0x138] sm:$0xff]
    %v2225 = vld [vmem:[#allocation10 + $0x140] sm:$0xff]
    %v2226 = vld [vmem:[#allocation10 + $0x148] sm:$0xff]
    %v2227 = vld [vmem:[#allocation10 + $0x150] sm:$0xff]
    %v2228 = vld [vmem:[#allocation10 + $0x158] sm:$0xff]
    %v2229 = vld [vmem:[#allocation10 + $0x160] sm:$0xff]
    %v2230 = vld [vmem:[#allocation10 + $0x168] sm:$0xff]
    %v2231 = vld [vmem:[#allocation10 + $0x170] sm:$0xff]
    %v2232 = vld [vmem:[#allocation10 + $0x178] sm:$0xff]
    %v2233 = vld [vmem:[#allocation10 + $0x180] sm:$0xff]
    %v2234 = vld [vmem:[#allocation10 + $0x188] sm:$0xff]
    %v2235 = vld [vmem:[#allocation10 + $0x190] sm:$0xff]
    %v2236 = vld [vmem:[#allocation10 + $0x198] sm:$0xff]
    %v2237 = vld [vmem:[#allocation10 + $0x1a0] sm:$0xff]
    %v2238 = vld [vmem:[#allocation10 + $0x1a8] sm:$0xff]
    %v2239 = vld [vmem:[#allocation10 + $0x1b0] sm:$0xff]
    %v2240 = vld [vmem:[#allocation10 + $0x1b8] sm:$0xff]
    %v2241 = vld [vmem:[#allocation10 + $0x1c0] sm:$0xff]
    %v2242 = vld [vmem:[#allocation10 + $0x1c8] sm:$0xff]
    %v2243 = vld [vmem:[#allocation10 + $0x1d0] sm:$0xff]
    %v2244 = vld [vmem:[#allocation10 + $0x1d8] sm:$0xff]
    %v2245 = vld [vmem:[#allocation10 + $0x1e0] sm:$0xff]
    %v2246 = vld [vmem:[#allocation10 + $0x1e8] sm:$0xff]
    %v2247 = vld [vmem:[#allocation10 + $0x1f0] sm:$0xff]
    %v2248 = vld [vmem:[#allocation10 + $0x1f8] sm:$0xff]
    %v2249 = vld [vmem:[#allocation10 + $0x200] sm:$0xff]
    %v2250 = vld [vmem:[#allocation10 + $0x208] sm:$0xff]
    %v2251 = vld [vmem:[#allocation10 + $0x210] sm:$0xff]
    %v2252 = vld [vmem:[#allocation10 + $0x218] sm:$0xff]
    %v2253 = vld [vmem:[#allocation10 + $0x220] sm:$0xff]
    %v2254 = vld [vmem:[#allocation10 + $0x228] sm:$0xff]
    %v2255 = vld [vmem:[#allocation10 + $0x230] sm:$0xff]
    %v2256 = vld [vmem:[#allocation10 + $0x238] sm:$0xff]
    %v2257 = vld [vmem:[#allocation10 + $0x240] sm:$0xff]
    %v2258 = vld [vmem:[#allocation10 + $0x248] sm:$0xff]
    %v2259 = vld [vmem:[#allocation10 + $0x250] sm:$0xff]
    %v2260 = vld [vmem:[#allocation10 + $0x258] sm:$0xff]
    %v2261 = vld [vmem:[#allocation10 + $0x260] sm:$0xff]
    %v2262 = vld [vmem:[#allocation10 + $0x268] sm:$0xff]
    %v2263 = vld [vmem:[#allocation10 + $0x270] sm:$0xff]
    %v2264 = vld [vmem:[#allocation10 + $0x278] sm:$0xff]
    %v2265 = vld [vmem:[#allocation10 + $0x280] sm:$0xff]
    %v2266 = vld [vmem:[#allocation10 + $0x288] sm:$0xff]
    %v2267 = vld [vmem:[#allocation10 + $0x290] sm:$0xff]
    %v2268 = vld [vmem:[#allocation10 + $0x298] sm:$0xff]
    %v2269 = vld [vmem:[#allocation10 + $0x2a0] sm:$0xff]
    %v2270 = vld [vmem:[#allocation10 + $0x2a8] sm:$0xff]
    %v2271 = vld [vmem:[#allocation10 + $0x2b0] sm:$0xff]
    %v2272 = vld [vmem:[#allocation10 + $0x2b8] sm:$0xff]
    %v2273 = vld [vmem:[#allocation10 + $0x2c0] sm:$0xff]
    %v2274 = vld [vmem:[#allocation10 + $0x2c8] sm:$0xff]
    %v2275 = vld [vmem:[#allocation10 + $0x2d0] sm:$0xff]
    %v2276 = vld [vmem:[#allocation10 + $0x2d8] sm:$0xff]
    %v2277 = vld [vmem:[#allocation10 + $0x2e0] sm:$0xff]
    %v2278 = vld [vmem:[#allocation10 + $0x2e8] sm:$0xff]
    %v2279 = vld [vmem:[#allocation10 + $0x2f0] sm:$0xff]
    %v2280 = vld [vmem:[#allocation10 + $0x2f8] sm:$0xff]
    %v2281 = vld [vmem:[#allocation10 + $0x300] sm:$0xff]
    %v2282 = vld [vmem:[#allocation10 + $0x308] sm:$0xff]
    %v2283 = vld [vmem:[#allocation10 + $0x310] sm:$0xff]
    %v2284 = vld [vmem:[#allocation10 + $0x318] sm:$0xff]
    %v2285 = vld [vmem:[#allocation10 + $0x320] sm:$0xff]
    %v2286 = vld [vmem:[#allocation10 + $0x328] sm:$0xff]
    %v2287 = vld [vmem:[#allocation10 + $0x330] sm:$0xff]
    %v2288 = vld [vmem:[#allocation10 + $0x338] sm:$0xff]
    %v2289 = vld [vmem:[#allocation10 + $0x340] sm:$0xff]
    %v2290 = vld [vmem:[#allocation10 + $0x348] sm:$0xff]
    %v2291 = vld [vmem:[#allocation10 + $0x350] sm:$0xff]
    %v2292 = vld [vmem:[#allocation10 + $0x358] sm:$0xff]
    %v2293 = vld [vmem:[#allocation10 + $0x360] sm:$0xff]
    %v2294 = vld [vmem:[#allocation10 + $0x368] sm:$0xff]
    %v2295 = vld [vmem:[#allocation10 + $0x370] sm:$0xff]
    %v2296 = vld [vmem:[#allocation10 + $0x378] sm:$0xff]
    %v2297 = vld [vmem:[#allocation10 + $0x380] sm:$0xff]
    %v2298 = vld [vmem:[#allocation10 + $0x388] sm:$0xff]
    %v2299 = vld [vmem:[#allocation10 + $0x390] sm:$0xff]
    %v2300 = vld [vmem:[#allocation10 + $0x398] sm:$0xff]
    %v2301 = vld [vmem:[#allocation10 + $0x3a0] sm:$0xff]
    %v2302 = vld [vmem:[#allocation10 + $0x3a8] sm:$0xff]
    %v2303 = vld [vmem:[#allocation10 + $0x3b0] sm:$0xff]
    %v2304 = vld [vmem:[#allocation10 + $0x3b8] sm:$0xff]
    %v2305 = vld [vmem:[#allocation10 + $0x3c0] sm:$0xff]
    %v2306 = vld [vmem:[#allocation10 + $0x3c8] sm:$0xff]
    %v2307 = vld [vmem:[#allocation10 + $0x3d0] sm:$0xff]
    %v2308 = vld [vmem:[#allocation10 + $0x3d8] sm:$0xff]
    %v2309 = vld [vmem:[#allocation10 + $0x3e0] sm:$0xff]
    %v2310 = vld [vmem:[#allocation10 + $0x3e8] sm:$0xff]
    %v2311 = vld [vmem:[#allocation10 + $0x3f0] sm:$0xff]
    %v2312 = vld [vmem:[#allocation10 + $0x3f8] sm:$0xff]
    %v2313 = vld [vmem:[%s8] sm:$0xf]
    %v2315 = vlaneseq
    %v2316 = vshrl.u32 %v2315, 7
    %v2317 = vsub.s32 0, %v2316
    %v2318 = vrot.slane %v2313, %v2317
    %v2319 = vlaneseq
    %v2320 = vshrl.u32 %v2319, 7
    %v2321 = vsub.s32 1, %v2320
    %v2322 = vrot.slane %v2313, %v2321
    %v2323 = vlaneseq
    %v2324 = vshrl.u32 %v2323, 7
    %v2325 = vsub.s32 2, %v2324
    %v2326 = vrot.slane %v2313, %v2325
    %v2327 = vlaneseq
    %v2328 = vshrl.u32 %v2327, 7
    %v2329 = vsub.s32 3, %v2328
    %v2330 = vrot.slane %v2313, %v2329
    %v2463 = vunpack.c.l.b16 %v2185
    %v2464 = vunpack.c.h.b16 %v2185
    %v2465 = vunpack.c.l.b16 %v2186
    %v2466 = vunpack.c.h.b16 %v2186
    %v2467 = vunpack.c.l.b16 %v2187
    %v2468 = vunpack.c.h.b16 %v2187
    %v2469 = vunpack.c.l.b16 %v2188
    %v2470 = vunpack.c.h.b16 %v2188
    %v2471 = vunpack.c.l.b16 %v2189
    %v2472 = vunpack.c.h.b16 %v2189
    %v2473 = vunpack.c.l.b16 %v2190
    %v2474 = vunpack.c.h.b16 %v2190
    %v2475 = vunpack.c.l.b16 %v2191
    %v2476 = vunpack.c.h.b16 %v2191
    %v2477 = vunpack.c.l.b16 %v2192
    %v2478 = vunpack.c.h.b16 %v2192
    %v2479 = vunpack.c.l.b16 %v2193
    %v2480 = vunpack.c.h.b16 %v2193
    %v2481 = vunpack.c.l.b16 %v2194
    %v2482 = vunpack.c.h.b16 %v2194
    %v2483 = vunpack.c.l.b16 %v2195
    %v2484 = vunpack.c.h.b16 %v2195
    %v2485 = vunpack.c.l.b16 %v2196
    %v2486 = vunpack.c.h.b16 %v2196
    %v2487 = vunpack.c.l.b16 %v2197
    %v2488 = vunpack.c.h.b16 %v2197
    %v2489 = vunpack.c.l.b16 %v2198
    %v2490 = vunpack.c.h.b16 %v2198
    %v2491 = vunpack.c.l.b16 %v2199
    %v2492 = vunpack.c.h.b16 %v2199
    %v2493 = vunpack.c.l.b16 %v2200
    %v2494 = vunpack.c.h.b16 %v2200
    %v2495 = vunpack.c.l.b16 %v2201
    %v2496 = vunpack.c.h.b16 %v2201
    %v2497 = vunpack.c.l.b16 %v2202
    %v2498 = vunpack.c.h.b16 %v2202
    %v2499 = vunpack.c.l.b16 %v2203
    %v2500 = vunpack.c.h.b16 %v2203
    %v2501 = vunpack.c.l.b16 %v2204
    %v2502 = vunpack.c.h.b16 %v2204
    %v2503 = vunpack.c.l.b16 %v2205
    %v2504 = vunpack.c.h.b16 %v2205
    %v2505 = vunpack.c.l.b16 %v2206
    %v2506 = vunpack.c.h.b16 %v2206
    %v2507 = vunpack.c.l.b16 %v2207
    %v2508 = vunpack.c.h.b16 %v2207
    %v2509 = vunpack.c.l.b16 %v2208
    %v2510 = vunpack.c.h.b16 %v2208
    %v2511 = vunpack.c.l.b16 %v2209
    %v2512 = vunpack.c.h.b16 %v2209
    %v2513 = vunpack.c.l.b16 %v2210
    %v2514 = vunpack.c.h.b16 %v2210
    %v2515 = vunpack.c.l.b16 %v2211
    %v2516 = vunpack.c.h.b16 %v2211
    %v2517 = vunpack.c.l.b16 %v2212
    %v2518 = vunpack.c.h.b16 %v2212
    %v2519 = vunpack.c.l.b16 %v2213
    %v2520 = vunpack.c.h.b16 %v2213
    %v2521 = vunpack.c.l.b16 %v2214
    %v2522 = vunpack.c.h.b16 %v2214
    %v2523 = vunpack.c.l.b16 %v2215
    %v2524 = vunpack.c.h.b16 %v2215
    %v2525 = vunpack.c.l.b16 %v2216
    %v2526 = vunpack.c.h.b16 %v2216
    %v2527 = vunpack.c.l.b16 %v2217
    %v2528 = vunpack.c.h.b16 %v2217
    %v2529 = vunpack.c.l.b16 %v2218
    %v2530 = vunpack.c.h.b16 %v2218
    %v2531 = vunpack.c.l.b16 %v2219
    %v2532 = vunpack.c.h.b16 %v2219
    %v2533 = vunpack.c.l.b16 %v2220
    %v2534 = vunpack.c.h.b16 %v2220
    %v2535 = vunpack.c.l.b16 %v2221
    %v2536 = vunpack.c.h.b16 %v2221
    %v2537 = vunpack.c.l.b16 %v2222
    %v2538 = vunpack.c.h.b16 %v2222
    %v2539 = vunpack.c.l.b16 %v2223
    %v2540 = vunpack.c.h.b16 %v2223
    %v2541 = vunpack.c.l.b16 %v2224
    %v2542 = vunpack.c.h.b16 %v2224
    %v2543 = vunpack.c.l.b16 %v2225
    %v2544 = vunpack.c.h.b16 %v2225
    %v2545 = vunpack.c.l.b16 %v2226
    %v2546 = vunpack.c.h.b16 %v2226
    %v2547 = vunpack.c.l.b16 %v2227
    %v2548 = vunpack.c.h.b16 %v2227
    %v2549 = vunpack.c.l.b16 %v2228
    %v2550 = vunpack.c.h.b16 %v2228
    %v2551 = vunpack.c.l.b16 %v2229
    %v2552 = vunpack.c.h.b16 %v2229
    %v2553 = vunpack.c.l.b16 %v2230
    %v2554 = vunpack.c.h.b16 %v2230
    %v2555 = vunpack.c.l.b16 %v2231
    %v2556 = vunpack.c.h.b16 %v2231
    %v2557 = vunpack.c.l.b16 %v2232
    %v2558 = vunpack.c.h.b16 %v2232
    %v2559 = vunpack.c.l.b16 %v2233
    %v2560 = vunpack.c.h.b16 %v2233
    %v2561 = vunpack.c.l.b16 %v2234
    %v2562 = vunpack.c.h.b16 %v2234
    %v2563 = vunpack.c.l.b16 %v2235
    %v2564 = vunpack.c.h.b16 %v2235
    %v2565 = vunpack.c.l.b16 %v2236
    %v2566 = vunpack.c.h.b16 %v2236
    %v2567 = vunpack.c.l.b16 %v2237
    %v2568 = vunpack.c.h.b16 %v2237
    %v2569 = vunpack.c.l.b16 %v2238
    %v2570 = vunpack.c.h.b16 %v2238
    %v2571 = vunpack.c.l.b16 %v2239
    %v2572 = vunpack.c.h.b16 %v2239
    %v2573 = vunpack.c.l.b16 %v2240
    %v2574 = vunpack.c.h.b16 %v2240
    %v2575 = vunpack.c.l.b16 %v2241
    %v2576 = vunpack.c.h.b16 %v2241
    %v2577 = vunpack.c.l.b16 %v2242
    %v2578 = vunpack.c.h.b16 %v2242
    %v2579 = vunpack.c.l.b16 %v2243
    %v2580 = vunpack.c.h.b16 %v2243
    %v2581 = vunpack.c.l.b16 %v2244
    %v2582 = vunpack.c.h.b16 %v2244
    %v2583 = vunpack.c.l.b16 %v2245
    %v2584 = vunpack.c.h.b16 %v2245
    %v2585 = vunpack.c.l.b16 %v2246
    %v2586 = vunpack.c.h.b16 %v2246
    %v2587 = vunpack.c.l.b16 %v2247
    %v2588 = vunpack.c.h.b16 %v2247
    %v2589 = vunpack.c.l.b16 %v2248
    %v2590 = vunpack.c.h.b16 %v2248
    %v2591 = vunpack.c.l.b16 %v2249
    %v2592 = vunpack.c.h.b16 %v2249
    %v2593 = vunpack.c.l.b16 %v2250
    %v2594 = vunpack.c.h.b16 %v2250
    %v2595 = vunpack.c.l.b16 %v2251
    %v2596 = vunpack.c.h.b16 %v2251
    %v2597 = vunpack.c.l.b16 %v2252
    %v2598 = vunpack.c.h.b16 %v2252
    %v2599 = vunpack.c.l.b16 %v2253
    %v2600 = vunpack.c.h.b16 %v2253
    %v2601 = vunpack.c.l.b16 %v2254
    %v2602 = vunpack.c.h.b16 %v2254
    %v2603 = vunpack.c.l.b16 %v2255
    %v2604 = vunpack.c.h.b16 %v2255
    %v2605 = vunpack.c.l.b16 %v2256
    %v2606 = vunpack.c.h.b16 %v2256
    %v2607 = vunpack.c.l.b16 %v2257
    %v2608 = vunpack.c.h.b16 %v2257
    %v2609 = vunpack.c.l.b16 %v2258
    %v2610 = vunpack.c.h.b16 %v2258
    %v2611 = vunpack.c.l.b16 %v2259
    %v2612 = vunpack.c.h.b16 %v2259
    %v2613 = vunpack.c.l.b16 %v2260
    %v2614 = vunpack.c.h.b16 %v2260
    %v2615 = vunpack.c.l.b16 %v2261
    %v2616 = vunpack.c.h.b16 %v2261
    %v2617 = vunpack.c.l.b16 %v2262
    %v2618 = vunpack.c.h.b16 %v2262
    %v2619 = vunpack.c.l.b16 %v2263
    %v2620 = vunpack.c.h.b16 %v2263
    %v2621 = vunpack.c.l.b16 %v2264
    %v2622 = vunpack.c.h.b16 %v2264
    %v2623 = vunpack.c.l.b16 %v2265
    %v2624 = vunpack.c.h.b16 %v2265
    %v2625 = vunpack.c.l.b16 %v2266
    %v2626 = vunpack.c.h.b16 %v2266
    %v2627 = vunpack.c.l.b16 %v2267
    %v2628 = vunpack.c.h.b16 %v2267
    %v2629 = vunpack.c.l.b16 %v2268
    %v2630 = vunpack.c.h.b16 %v2268
    %v2631 = vunpack.c.l.b16 %v2269
    %v2632 = vunpack.c.h.b16 %v2269
    %v2633 = vunpack.c.l.b16 %v2270
    %v2634 = vunpack.c.h.b16 %v2270
    %v2635 = vunpack.c.l.b16 %v2271
    %v2636 = vunpack.c.h.b16 %v2271
    %v2637 = vunpack.c.l.b16 %v2272
    %v2638 = vunpack.c.h.b16 %v2272
    %v2639 = vunpack.c.l.b16 %v2273
    %v2640 = vunpack.c.h.b16 %v2273
    %v2641 = vunpack.c.l.b16 %v2274
    %v2642 = vunpack.c.h.b16 %v2274
    %v2643 = vunpack.c.l.b16 %v2275
    %v2644 = vunpack.c.h.b16 %v2275
    %v2645 = vunpack.c.l.b16 %v2276
    %v2646 = vunpack.c.h.b16 %v2276
    %v2647 = vunpack.c.l.b16 %v2277
    %v2648 = vunpack.c.h.b16 %v2277
    %v2649 = vunpack.c.l.b16 %v2278
    %v2650 = vunpack.c.h.b16 %v2278
    %v2651 = vunpack.c.l.b16 %v2279
    %v2652 = vunpack.c.h.b16 %v2279
    %v2653 = vunpack.c.l.b16 %v2280
    %v2654 = vunpack.c.h.b16 %v2280
    %v2655 = vunpack.c.l.b16 %v2281
    %v2656 = vunpack.c.h.b16 %v2281
    %v2657 = vunpack.c.l.b16 %v2282
    %v2658 = vunpack.c.h.b16 %v2282
    %v2659 = vunpack.c.l.b16 %v2283
    %v2660 = vunpack.c.h.b16 %v2283
    %v2661 = vunpack.c.l.b16 %v2284
    %v2662 = vunpack.c.h.b16 %v2284
    %v2663 = vunpack.c.l.b16 %v2285
    %v2664 = vunpack.c.h.b16 %v2285
    %v2665 = vunpack.c.l.b16 %v2286
    %v2666 = vunpack.c.h.b16 %v2286
    %v2667 = vunpack.c.l.b16 %v2287
    %v2668 = vunpack.c.h.b16 %v2287
    %v2669 = vunpack.c.l.b16 %v2288
    %v2670 = vunpack.c.h.b16 %v2288
    %v2671 = vunpack.c.l.b16 %v2289
    %v2672 = vunpack.c.h.b16 %v2289
    %v2673 = vunpack.c.l.b16 %v2290
    %v2674 = vunpack.c.h.b16 %v2290
    %v2675 = vunpack.c.l.b16 %v2291
    %v2676 = vunpack.c.h.b16 %v2291
    %v2677 = vunpack.c.l.b16 %v2292
    %v2678 = vunpack.c.h.b16 %v2292
    %v2679 = vunpack.c.l.b16 %v2293
    %v2680 = vunpack.c.h.b16 %v2293
    %v2681 = vunpack.c.l.b16 %v2294
    %v2682 = vunpack.c.h.b16 %v2294
    %v2683 = vunpack.c.l.b16 %v2295
    %v2684 = vunpack.c.h.b16 %v2295
    %v2685 = vunpack.c.l.b16 %v2296
    %v2686 = vunpack.c.h.b16 %v2296
    %v2687 = vunpack.c.l.b16 %v2297
    %v2688 = vunpack.c.h.b16 %v2297
    %v2689 = vunpack.c.l.b16 %v2298
    %v2690 = vunpack.c.h.b16 %v2298
    %v2691 = vunpack.c.l.b16 %v2299
    %v2692 = vunpack.c.h.b16 %v2299
    %v2693 = vunpack.c.l.b16 %v2300
    %v2694 = vunpack.c.h.b16 %v2300
    %v2695 = vunpack.c.l.b16 %v2301
    %v2696 = vunpack.c.h.b16 %v2301
    %v2697 = vunpack.c.l.b16 %v2302
    %v2698 = vunpack.c.h.b16 %v2302
    %v2699 = vunpack.c.l.b16 %v2303
    %v2700 = vunpack.c.h.b16 %v2303
    %v2701 = vunpack.c.l.b16 %v2304
    %v2702 = vunpack.c.h.b16 %v2304
    %v2703 = vunpack.c.l.b16 %v2305
    %v2704 = vunpack.c.h.b16 %v2305
    %v2705 = vunpack.c.l.b16 %v2306
    %v2706 = vunpack.c.h.b16 %v2306
    %v2707 = vunpack.c.l.b16 %v2307
    %v2708 = vunpack.c.h.b16 %v2307
    %v2709 = vunpack.c.l.b16 %v2308
    %v2710 = vunpack.c.h.b16 %v2308
    %v2711 = vunpack.c.l.b16 %v2309
    %v2712 = vunpack.c.h.b16 %v2309
    %v2713 = vunpack.c.l.b16 %v2310
    %v2714 = vunpack.c.h.b16 %v2310
    %v2715 = vunpack.c.l.b16 %v2311
    %v2716 = vunpack.c.h.b16 %v2311
    %v2717 = vunpack.c.l.b16 %v2312
    %v2718 = vunpack.c.h.b16 %v2312
    %v2719 = vpack.c.b16 %v2467, %v2463
    %v2720 = vpack.c.b16 %v2468, %v2464
    %v2721 = vpack.c.b16 %v2469, %v2465
    %v2722 = vpack.c.b16 %v2470, %v2466
    %v2723 = vpack.c.b16 %v2475, %v2471
    %v2724 = vpack.c.b16 %v2476, %v2472
    %v2725 = vpack.c.b16 %v2477, %v2473
    %v2726 = vpack.c.b16 %v2478, %v2474
    %v2727 = vpack.c.b16 %v2483, %v2479
    %v2728 = vpack.c.b16 %v2484, %v2480
    %v2729 = vpack.c.b16 %v2485, %v2481
    %v2730 = vpack.c.b16 %v2486, %v2482
    %v2731 = vpack.c.b16 %v2491, %v2487
    %v2732 = vpack.c.b16 %v2492, %v2488
    %v2733 = vpack.c.b16 %v2493, %v2489
    %v2734 = vpack.c.b16 %v2494, %v2490
    %v2735 = vpack.c.b16 %v2499, %v2495
    %v2736 = vpack.c.b16 %v2500, %v2496
    %v2737 = vpack.c.b16 %v2501, %v2497
    %v2738 = vpack.c.b16 %v2502, %v2498
    %v2739 = vpack.c.b16 %v2507, %v2503
    %v2740 = vpack.c.b16 %v2508, %v2504
    %v2741 = vpack.c.b16 %v2509, %v2505
    %v2742 = vpack.c.b16 %v2510, %v2506
    %v2743 = vpack.c.b16 %v2515, %v2511
    %v2744 = vpack.c.b16 %v2516, %v2512
    %v2745 = vpack.c.b16 %v2517, %v2513
    %v2746 = vpack.c.b16 %v2518, %v2514
    %v2747 = vpack.c.b16 %v2523, %v2519
    %v2748 = vpack.c.b16 %v2524, %v2520
    %v2749 = vpack.c.b16 %v2525, %v2521
    %v2750 = vpack.c.b16 %v2526, %v2522
    %v2751 = vpack.c.b16 %v2531, %v2527
    %v2752 = vpack.c.b16 %v2532, %v2528
    %v2753 = vpack.c.b16 %v2533, %v2529
    %v2754 = vpack.c.b16 %v2534, %v2530
    %v2755 = vpack.c.b16 %v2539, %v2535
    %v2756 = vpack.c.b16 %v2540, %v2536
    %v2757 = vpack.c.b16 %v2541, %v2537
    %v2758 = vpack.c.b16 %v2542, %v2538
    %v2759 = vpack.c.b16 %v2547, %v2543
    %v2760 = vpack.c.b16 %v2548, %v2544
    %v2761 = vpack.c.b16 %v2549, %v2545
    %v2762 = vpack.c.b16 %v2550, %v2546
    %v2763 = vpack.c.b16 %v2555, %v2551
    %v2764 = vpack.c.b16 %v2556, %v2552
    %v2765 = vpack.c.b16 %v2557, %v2553
    %v2766 = vpack.c.b16 %v2558, %v2554
    %v2767 = vpack.c.b16 %v2563, %v2559
    %v2768 = vpack.c.b16 %v2564, %v2560
    %v2769 = vpack.c.b16 %v2565, %v2561
    %v2770 = vpack.c.b16 %v2566, %v2562
    %v2771 = vpack.c.b16 %v2571, %v2567
    %v2772 = vpack.c.b16 %v2572, %v2568
    %v2773 = vpack.c.b16 %v2573, %v2569
    %v2774 = vpack.c.b16 %v2574, %v2570
    %v2775 = vpack.c.b16 %v2579, %v2575
    %v2776 = vpack.c.b16 %v2580, %v2576
    %v2777 = vpack.c.b16 %v2581, %v2577
    %v2778 = vpack.c.b16 %v2582, %v2578
    %v2779 = vpack.c.b16 %v2587, %v2583
    %v2780 = vpack.c.b16 %v2588, %v2584
    %v2781 = vpack.c.b16 %v2589, %v2585
    %v2782 = vpack.c.b16 %v2590, %v2586
    %v2783 = vpack.c.b16 %v2595, %v2591
    %v2784 = vpack.c.b16 %v2596, %v2592
    %v2785 = vpack.c.b16 %v2597, %v2593
    %v2786 = vpack.c.b16 %v2598, %v2594
    %v2787 = vpack.c.b16 %v2603, %v2599
    %v2788 = vpack.c.b16 %v2604, %v2600
    %v2789 = vpack.c.b16 %v2605, %v2601
    %v2790 = vpack.c.b16 %v2606, %v2602
    %v2791 = vpack.c.b16 %v2611, %v2607
    %v2792 = vpack.c.b16 %v2612, %v2608
    %v2793 = vpack.c.b16 %v2613, %v2609
    %v2794 = vpack.c.b16 %v2614, %v2610
    %v2795 = vpack.c.b16 %v2619, %v2615
    %v2796 = vpack.c.b16 %v2620, %v2616
    %v2797 = vpack.c.b16 %v2621, %v2617
    %v2798 = vpack.c.b16 %v2622, %v2618
    %v2799 = vpack.c.b16 %v2627, %v2623
    %v2800 = vpack.c.b16 %v2628, %v2624
    %v2801 = vpack.c.b16 %v2629, %v2625
    %v2802 = vpack.c.b16 %v2630, %v2626
    %v2803 = vpack.c.b16 %v2635, %v2631
    %v2804 = vpack.c.b16 %v2636, %v2632
    %v2805 = vpack.c.b16 %v2637, %v2633
    %v2806 = vpack.c.b16 %v2638, %v2634
    %v2807 = vpack.c.b16 %v2643, %v2639
    %v2808 = vpack.c.b16 %v2644, %v2640
    %v2809 = vpack.c.b16 %v2645, %v2641
    %v2810 = vpack.c.b16 %v2646, %v2642
    %v2811 = vpack.c.b16 %v2651, %v2647
    %v2812 = vpack.c.b16 %v2652, %v2648
    %v2813 = vpack.c.b16 %v2653, %v2649
    %v2814 = vpack.c.b16 %v2654, %v2650
    %v2815 = vpack.c.b16 %v2659, %v2655
    %v2816 = vpack.c.b16 %v2660, %v2656
    %v2817 = vpack.c.b16 %v2661, %v2657
    %v2818 = vpack.c.b16 %v2662, %v2658
    %v2819 = vpack.c.b16 %v2667, %v2663
    %v2820 = vpack.c.b16 %v2668, %v2664
    %v2821 = vpack.c.b16 %v2669, %v2665
    %v2822 = vpack.c.b16 %v2670, %v2666
    %v2823 = vpack.c.b16 %v2675, %v2671
    %v2824 = vpack.c.b16 %v2676, %v2672
    %v2825 = vpack.c.b16 %v2677, %v2673
    %v2826 = vpack.c.b16 %v2678, %v2674
    %v2827 = vpack.c.b16 %v2683, %v2679
    %v2828 = vpack.c.b16 %v2684, %v2680
    %v2829 = vpack.c.b16 %v2685, %v2681
    %v2830 = vpack.c.b16 %v2686, %v2682
    %v2831 = vpack.c.b16 %v2691, %v2687
    %v2832 = vpack.c.b16 %v2692, %v2688
    %v2833 = vpack.c.b16 %v2693, %v2689
    %v2834 = vpack.c.b16 %v2694, %v2690
    %v2835 = vpack.c.b16 %v2699, %v2695
    %v2836 = vpack.c.b16 %v2700, %v2696
    %v2837 = vpack.c.b16 %v2701, %v2697
    %v2838 = vpack.c.b16 %v2702, %v2698
    %v2839 = vpack.c.b16 %v2707, %v2703
    %v2840 = vpack.c.b16 %v2708, %v2704
    %v2841 = vpack.c.b16 %v2709, %v2705
    %v2842 = vpack.c.b16 %v2710, %v2706
    %v2843 = vpack.c.b16 %v2715, %v2711
    %v2844 = vpack.c.b16 %v2716, %v2712
    %v2845 = vpack.c.b16 %v2717, %v2713
    %v2846 = vpack.c.b16 %v2718, %v2714
    %2975 = vmatprep.subr.bf16.mxu0 %v2720
    %2976 = vmatpush1.bf16.msra.mxu0 %v2719
    %2977 = vmatprep.subr.bf16.mxu0 %v2724
    %2978 = vmatpush1.bf16.msra.mxu0 %v2723
    %2979 = vmatprep.subr.bf16.mxu0 %v2728
    %2980 = vmatpush1.bf16.msra.mxu0 %v2727
    %2981 = vmatprep.subr.bf16.mxu0 %v2732
    %2982 = vmatpush1.bf16.msra.mxu0 %v2731
    %2983 = vmatprep.subr.bf16.mxu0 %v2736
    %2984 = vmatpush1.bf16.msra.mxu0 %v2735
    %2985 = vmatprep.subr.bf16.mxu0 %v2740
    %2986 = vmatpush1.bf16.msra.mxu0 %v2739
    %2987 = vmatprep.subr.bf16.mxu0 %v2744
    %2988 = vmatpush1.bf16.msra.mxu0 %v2743
    %2989 = vmatprep.subr.bf16.mxu0 %v2748
    %2990 = vmatpush1.bf16.msra.mxu0 %v2747
    %2991 = vmatprep.subr.bf16.mxu0 %v2752
    %2992 = vmatpush1.bf16.msra.mxu0 %v2751
    %2993 = vmatprep.subr.bf16.mxu0 %v2756
    %2994 = vmatpush1.bf16.msra.mxu0 %v2755
    %2995 = vmatprep.subr.bf16.mxu0 %v2760
    %2996 = vmatpush1.bf16.msra.mxu0 %v2759
    %2997 = vmatprep.subr.bf16.mxu0 %v2764
    %2998 = vmatpush1.bf16.msra.mxu0 %v2763
    %2999 = vmatprep.subr.bf16.mxu0 %v2768
    %3000 = vmatpush1.bf16.msra.mxu0 %v2767
    %3001 = vmatprep.subr.bf16.mxu0 %v2772
    %3002 = vmatpush1.bf16.msra.mxu0 %v2771
    %3003 = vmatprep.subr.bf16.mxu0 %v2776
    %3004 = vmatpush1.bf16.msra.mxu0 %v2775
    %3005 = vmatprep.subr.bf16.mxu0 %v2780
    %3006 = vmatpush1.bf16.msra.mxu0 %v2779
    %3007 = vmatprep.mubr.bf16.mxu0 %v2182
    %3008 = vmatmul.mubr.bf16.gmra.mrb[0].mxu0 %v2181
    %v3009 = vpop.f32.mrb[0].mxu0
    %v3010 = vadd.f32 %v2318, %v3009
    %v3011 = vpop.f32.mrb[0].mxu0
    %v3012 = vadd.f32 %v2322, %v3011
    %v3013 = vpop.f32.mrb[0].mxu0
    %v3014 = vpop.f32.mrb[0].mxu0
    %3015 = vdwg.mxu0
    %3016 = vmatprep.subr.bf16.mxu0 %v2784
    %3017 = vmatpush1.bf16.msra.mxu0 %v2783
    %3018 = vmatprep.subr.bf16.mxu0 %v2788
    %3019 = vmatpush1.bf16.msra.mxu0 %v2787
    %3020 = vmatprep.subr.bf16.mxu0 %v2792
    %3021 = vmatpush1.bf16.msra.mxu0 %v2791
    %3022 = vmatprep.subr.bf16.mxu0 %v2796
    %3023 = vmatpush1.bf16.msra.mxu0 %v2795
    %3024 = vmatprep.subr.bf16.mxu0 %v2800
    %3025 = vmatpush1.bf16.msra.mxu0 %v2799
    %3026 = vmatprep.subr.bf16.mxu0 %v2804
    %3027 = vmatpush1.bf16.msra.mxu0 %v2803
    %3028 = vmatprep.subr.bf16.mxu0 %v2808
    %3029 = vmatpush1.bf16.msra.mxu0 %v2807
    %3030 = vmatprep.subr.bf16.mxu0 %v2812
    %3031 = vmatpush1.bf16.msra.mxu0 %v2811
    %3032 = vmatprep.subr.bf16.mxu0 %v2816
    %3033 = vmatpush1.bf16.msra.mxu0 %v2815
    %3034 = vmatprep.subr.bf16.mxu0 %v2820
    %3035 = vmatpush1.bf16.msra.mxu0 %v2819
    %3036 = vmatprep.subr.bf16.mxu0 %v2824
    %3037 = vmatpush1.bf16.msra.mxu0 %v2823
    %3038 = vmatprep.subr.bf16.mxu0 %v2828
    %3039 = vmatpush1.bf16.msra.mxu0 %v2827
    %3040 = vmatprep.subr.bf16.mxu0 %v2832
    %3041 = vmatpush1.bf16.msra.mxu0 %v2831
    %3042 = vmatprep.subr.bf16.mxu0 %v2836
    %3043 = vmatpush1.bf16.msra.mxu0 %v2835
    %3044 = vmatprep.subr.bf16.mxu0 %v2840
    %3045 = vmatpush1.bf16.msra.mxu0 %v2839
    %3046 = vmatprep.subr.bf16.mxu0 %v2844
    %3047 = vmatpush1.bf16.msra.mxu0 %v2843
    %3048 = vmatprep.mubr.bf16.mxu0 %v2184
    %3049 = vmatmul.mubr.bf16.gmra.mrb[0].mxu0 %v2183
    %v3050 = vpop.f32.mrb[0].mxu0
    %v3051 = vadd.f32 %v3010, %v3050
    %v3052 = vpop.f32.mrb[0].mxu0
    %v3053 = vadd.f32 %v3012, %v3052
    %v3054 = vpop.f32.mrb[0].mxu0
    %v3055 = vpop.f32.mrb[0].mxu0
    %3056 = vdwg.mxu0
    %3057 = vmatprep.subr.bf16.mxu0 %v2722
    %3058 = vmatpush1.bf16.msra.mxu0 %v2721
    %3059 = vmatprep.subr.bf16.mxu0 %v2726
    %3060 = vmatpush1.bf16.msra.mxu0 %v2725
    %3061 = vmatprep.subr.bf16.mxu0 %v2730
    %3062 = vmatpush1.bf16.msra.mxu0 %v2729
    %3063 = vmatprep.subr.bf16.mxu0 %v2734
    %3064 = vmatpush1.bf16.msra.mxu0 %v2733
    %3065 = vmatprep.subr.bf16.mxu0 %v2738
    %3066 = vmatpush1.bf16.msra.mxu0 %v2737
    %3067 = vmatprep.subr.bf16.mxu0 %v2742
    %3068 = vmatpush1.bf16.msra.mxu0 %v2741
    %3069 = vmatprep.subr.bf16.mxu0 %v2746
    %3070 = vmatpush1.bf16.msra.mxu0 %v2745
    %3071 = vmatprep.subr.bf16.mxu0 %v2750
    %3072 = vmatpush1.bf16.msra.mxu0 %v2749
    %3073 = vmatprep.subr.bf16.mxu0 %v2754
    %3074 = vmatpush1.bf16.msra.mxu0 %v2753
    %3075 = vmatprep.subr.bf16.mxu0 %v2758
    %3076 = vmatpush1.bf16.msra.mxu0 %v2757
    %3077 = vmatprep.subr.bf16.mxu0 %v2762
    %3078 = vmatpush1.bf16.msra.mxu0 %v2761
    %3079 = vmatprep.subr.bf16.mxu0 %v2766
    %3080 = vmatpush1.bf16.msra.mxu0 %v2765
    %3081 = vmatprep.subr.bf16.mxu0 %v2770
    %3082 = vmatpush1.bf16.msra.mxu0 %v2769
    %3083 = vmatprep.subr.bf16.mxu0 %v2774
    %3084 = vmatpush1.bf16.msra.mxu0 %v2773
    %3085 = vmatprep.subr.bf16.mxu0 %v2778
    %3086 = vmatpush1.bf16.msra.mxu0 %v2777
    %3087 = vmatprep.subr.bf16.mxu0 %v2782
    %3088 = vmatpush1.bf16.msra.mxu0 %v2781
    %3089 = vmatprep.mubr.bf16.mxu0 %v2182
    %3090 = vmatmul.mubr.bf16.gmra.mrb[0].mxu0 %v2181
    %v3091 = vpop.f32.mrb[0].mxu0
    %v3092 = vadd.f32 %v2326, %v3091
    %v3093 = vpop.f32.mrb[0].mxu0
    %v3094 = vadd.f32 %v2330, %v3093
    %v3095 = vpop.f32.mrb[0].mxu0
    %v3096 = vpop.f32.mrb[0].mxu0
    %3097 = vdwg.mxu0
    %3098 = vmatprep.subr.bf16.mxu0 %v2786
    %3099 = vmatpush1.bf16.msra.mxu0 %v2785
    %3100 = vmatprep.subr.bf16.mxu0 %v2790
    %3101 = vmatpush1.bf16.msra.mxu0 %v2789
    %3102 = vmatprep.subr.bf16.mxu0 %v2794
    %3103 = vmatpush1.bf16.msra.mxu0 %v2793
    %3104 = vmatprep.subr.bf16.mxu0 %v2798
    %3105 = vmatpush1.bf16.msra.mxu0 %v2797
    %3106 = vmatprep.subr.bf16.mxu0 %v2802
    %3107 = vmatpush1.bf16.msra.mxu0 %v2801
    %3108 = vmatprep.subr.bf16.mxu0 %v2806
    %3109 = vmatpush1.bf16.msra.mxu0 %v2805
    %3110 = vmatprep.subr.bf16.mxu0 %v2810
    %3111 = vmatpush1.bf16.msra.mxu0 %v2809
    %3112 = vmatprep.subr.bf16.mxu0 %v2814
    %3113 = vmatpush1.bf16.msra.mxu0 %v2813
    %3114 = vmatprep.subr.bf16.mxu0 %v2818
    %3115 = vmatpush1.bf16.msra.mxu0 %v2817
    %3116 = vmatprep.subr.bf16.mxu0 %v2822
    %3117 = vmatpush1.bf16.msra.mxu0 %v2821
    %3118 = vmatprep.subr.bf16.mxu0 %v2826
    %3119 = vmatpush1.bf16.msra.mxu0 %v2825
    %3120 = vmatprep.subr.bf16.mxu0 %v2830
    %3121 = vmatpush1.bf16.msra.mxu0 %v2829
    %3122 = vmatprep.subr.bf16.mxu0 %v2834
    %3123 = vmatpush1.bf16.msra.mxu0 %v2833
    %3124 = vmatprep.subr.bf16.mxu0 %v2838
    %3125 = vmatpush1.bf16.msra.mxu0 %v2837
    %3126 = vmatprep.subr.bf16.mxu0 %v2842
    %3127 = vmatpush1.bf16.msra.mxu0 %v2841
    %3128 = vmatprep.subr.bf16.mxu0 %v2846
    %3129 = vmatpush1.bf16.msra.mxu0 %v2845
    %3130 = vmatprep.mubr.bf16.mxu0 %v2184
    %3131 = vmatmul.mubr.bf16.gmra.mrb[0].mxu0 %v2183
    %v3132 = vpop.f32.mrb[0].mxu0
    %v3133 = vadd.f32 %v3092, %v3132
    %v3134 = vpop.f32.mrb[0].mxu0
    %v3135 = vadd.f32 %v3094, %v3134
    %v3136 = vpop.f32.mrb[0].mxu0
    %v3137 = vpop.f32.mrb[0].mxu0
    %3138 = vdwg.mxu0
    %v3139 = vmax.f32 %v3051, 0.0
    %v3140 = vmax.f32 %v3053, 0.0
    %v3141 = vmax.f32 %v3133, 0.0
    %v3142 = vmax.f32 %v3135, 0.0
    %v3143 = vpack.c.bf16 %v3139, %v3139
    %v3144 = vpack.c.bf16 %v3140, %v3140
    %v3145 = vpack.c.bf16 %v3141, %v3141
    %v3146 = vpack.c.bf16 %v3142, %v3142
    %v3147 = vld [vmem:[#allocation11] sm:$0xf]
    %v3148 = vld [vmem:[#allocation11 + $0x4] sm:$0xf]
    %v3149 = vld [vmem:[#allocation11 + $0x8] sm:$0xf]
    %v3150 = vld [vmem:[#allocation11 + $0xc] sm:$0xf]
    %v3151 = vld [vmem:[#allocation11 + $0x10] sm:$0xf]
    %v3152 = vld [vmem:[#allocation11 + $0x14] sm:$0xf]
    %v3153 = vld [vmem:[#allocation11 + $0x18] sm:$0xf]
    %v3154 = vld [vmem:[#allocation11 + $0x1c] sm:$0xf]
    %v3155 = vld [vmem:[#allocation11 + $0x20] sm:$0xf]
    %v3156 = vld [vmem:[#allocation11 + $0x24] sm:$0xf]
    %v3157 = vld [vmem:[#allocation11 + $0x28] sm:$0xf]
    %v3158 = vld [vmem:[#allocation11 + $0x2c] sm:$0xf]
    %v3159 = vld [vmem:[#allocation11 + $0x30] sm:$0xf]
    %v3160 = vld [vmem:[#allocation11 + $0x34] sm:$0xf]
    %v3161 = vld [vmem:[#allocation11 + $0x38] sm:$0xf]
    %v3162 = vld [vmem:[#allocation11 + $0x3c] sm:$0xf]
    %v3163 = vld [vmem:[#allocation11 + $0x40] sm:$0xf]
    %v3164 = vld [vmem:[#allocation11 + $0x44] sm:$0xf]
    %v3165 = vld [vmem:[#allocation11 + $0x48] sm:$0xf]
    %v3166 = vld [vmem:[#allocation11 + $0x4c] sm:$0xf]
    %v3167 = vld [vmem:[#allocation11 + $0x50] sm:$0xf]
    %v3168 = vld [vmem:[#allocation11 + $0x54] sm:$0xf]
    %v3169 = vld [vmem:[#allocation11 + $0x58] sm:$0xf]
    %v3170 = vld [vmem:[#allocation11 + $0x5c] sm:$0xf]
    %v3171 = vld [vmem:[#allocation11 + $0x60] sm:$0xf]
    %v3172 = vld [vmem:[#allocation11 + $0x64] sm:$0xf]
    %v3173 = vld [vmem:[#allocation11 + $0x68] sm:$0xf]
    %v3174 = vld [vmem:[#allocation11 + $0x6c] sm:$0xf]
    %v3175 = vld [vmem:[#allocation11 + $0x70] sm:$0xf]
    %v3176 = vld [vmem:[#allocation11 + $0x74] sm:$0xf]
    %v3177 = vld [vmem:[#allocation11 + $0x78] sm:$0xf]
    %v3178 = vld [vmem:[#allocation11 + $0x7c] sm:$0xf]
    %v3179 = vld [vmem:[#allocation11 + $0x80] sm:$0xf]
    %v3180 = vld [vmem:[#allocation11 + $0x84] sm:$0xf]
    %v3181 = vld [vmem:[#allocation11 + $0x88] sm:$0xf]
    %v3182 = vld [vmem:[#allocation11 + $0x8c] sm:$0xf]
    %v3183 = vld [vmem:[#allocation11 + $0x90] sm:$0xf]
    %v3184 = vld [vmem:[#allocation11 + $0x94] sm:$0xf]
    %v3185 = vld [vmem:[#allocation11 + $0x98] sm:$0xf]
    %v3186 = vld [vmem:[#allocation11 + $0x9c] sm:$0xf]
    %v3187 = vld [vmem:[#allocation11 + $0xa0] sm:$0xf]
    %v3188 = vld [vmem:[#allocation11 + $0xa4] sm:$0xf]
    %v3189 = vld [vmem:[#allocation11 + $0xa8] sm:$0xf]
    %v3190 = vld [vmem:[#allocation11 + $0xac] sm:$0xf]
    %v3191 = vld [vmem:[#allocation11 + $0xb0] sm:$0xf]
    %v3192 = vld [vmem:[#allocation11 + $0xb4] sm:$0xf]
    %v3193 = vld [vmem:[#allocation11 + $0xb8] sm:$0xf]
    %v3194 = vld [vmem:[#allocation11 + $0xbc] sm:$0xf]
    %v3195 = vld [vmem:[#allocation11 + $0xc0] sm:$0xf]
    %v3196 = vld [vmem:[#allocation11 + $0xc4] sm:$0xf]
    %v3197 = vld [vmem:[#allocation11 + $0xc8] sm:$0xf]
    %v3198 = vld [vmem:[#allocation11 + $0xcc] sm:$0xf]
    %v3199 = vld [vmem:[#allocation11 + $0xd0] sm:$0xf]
    %v3200 = vld [vmem:[#allocation11 + $0xd4] sm:$0xf]
    %v3201 = vld [vmem:[#allocation11 + $0xd8] sm:$0xf]
    %v3202 = vld [vmem:[#allocation11 + $0xdc] sm:$0xf]
    %v3203 = vld [vmem:[#allocation11 + $0xe0] sm:$0xf]
    %v3204 = vld [vmem:[#allocation11 + $0xe4] sm:$0xf]
    %v3205 = vld [vmem:[#allocation11 + $0xe8] sm:$0xf]
    %v3206 = vld [vmem:[#allocation11 + $0xec] sm:$0xf]
    %v3207 = vld [vmem:[#allocation11 + $0xf0] sm:$0xf]
    %v3208 = vld [vmem:[#allocation11 + $0xf4] sm:$0xf]
    %v3209 = vld [vmem:[#allocation11 + $0xf8] sm:$0xf]
    %v3210 = vld [vmem:[#allocation11 + $0xfc] sm:$0xf]
    %v3211 = vld [vmem:[%s10] sm:$0x1]
    %v3213 = vlaneseq
    %v3214 = vshrl.u32 %v3213, 7
    %v3215 = vsub.s32 0, %v3214
    %v3216 = vrot.slane %v3211, %v3215
    %v3282 = vunpack.c.l.b16 %v3147
    %v3283 = vunpack.c.l.b16 %v3148
    %v3284 = vunpack.c.l.b16 %v3149
    %v3285 = vunpack.c.l.b16 %v3150
    %v3286 = vunpack.c.l.b16 %v3151
    %v3287 = vunpack.c.l.b16 %v3152
    %v3288 = vunpack.c.l.b16 %v3153
    %v3289 = vunpack.c.l.b16 %v3154
    %v3290 = vunpack.c.l.b16 %v3155
    %v3291 = vunpack.c.l.b16 %v3156
    %v3292 = vunpack.c.l.b16 %v3157
    %v3293 = vunpack.c.l.b16 %v3158
    %v3294 = vunpack.c.l.b16 %v3159
    %v3295 = vunpack.c.l.b16 %v3160
    %v3296 = vunpack.c.l.b16 %v3161
    %v3297 = vunpack.c.l.b16 %v3162
    %v3298 = vunpack.c.l.b16 %v3163
    %v3299 = vunpack.c.l.b16 %v3164
    %v3300 = vunpack.c.l.b16 %v3165
    %v3301 = vunpack.c.l.b16 %v3166
    %v3302 = vunpack.c.l.b16 %v3167
    %v3303 = vunpack.c.l.b16 %v3168
    %v3304 = vunpack.c.l.b16 %v3169
    %v3305 = vunpack.c.l.b16 %v3170
    %v3306 = vunpack.c.l.b16 %v3171
    %v3307 = vunpack.c.l.b16 %v3172
    %v3308 = vunpack.c.l.b16 %v3173
    %v3309 = vunpack.c.l.b16 %v3174
    %v3310 = vunpack.c.l.b16 %v3175
    %v3311 = vunpack.c.l.b16 %v3176
    %v3312 = vunpack.c.l.b16 %v3177
    %v3313 = vunpack.c.l.b16 %v3178
    %v3314 = vunpack.c.l.b16 %v3179
    %v3315 = vunpack.c.l.b16 %v3180
    %v3316 = vunpack.c.l.b16 %v3181
    %v3317 = vunpack.c.l.b16 %v3182
    %v3318 = vunpack.c.l.b16 %v3183
    %v3319 = vunpack.c.l.b16 %v3184
    %v3320 = vunpack.c.l.b16 %v3185
    %v3321 = vunpack.c.l.b16 %v3186
    %v3322 = vunpack.c.l.b16 %v3187
    %v3323 = vunpack.c.l.b16 %v3188
    %v3324 = vunpack.c.l.b16 %v3189
    %v3325 = vunpack.c.l.b16 %v3190
    %v3326 = vunpack.c.l.b16 %v3191
    %v3327 = vunpack.c.l.b16 %v3192
    %v3328 = vunpack.c.l.b16 %v3193
    %v3329 = vunpack.c.l.b16 %v3194
    %v3330 = vunpack.c.l.b16 %v3195
    %v3331 = vunpack.c.l.b16 %v3196
    %v3332 = vunpack.c.l.b16 %v3197
    %v3333 = vunpack.c.l.b16 %v3198
    %v3334 = vunpack.c.l.b16 %v3199
    %v3335 = vunpack.c.l.b16 %v3200
    %v3336 = vunpack.c.l.b16 %v3201
    %v3337 = vunpack.c.l.b16 %v3202
    %v3338 = vunpack.c.l.b16 %v3203
    %v3339 = vunpack.c.l.b16 %v3204
    %v3340 = vunpack.c.l.b16 %v3205
    %v3341 = vunpack.c.l.b16 %v3206
    %v3342 = vunpack.c.l.b16 %v3207
    %v3343 = vunpack.c.l.b16 %v3208
    %v3344 = vunpack.c.l.b16 %v3209
    %v3345 = vunpack.c.l.b16 %v3210
    %v3346 = vpack.c.b16 %v3283, %v3282
    %v3347 = vpack.c.b16 %v3285, %v3284
    %v3348 = vpack.c.b16 %v3287, %v3286
    %v3349 = vpack.c.b16 %v3289, %v3288
    %v3350 = vpack.c.b16 %v3291, %v3290
    %v3351 = vpack.c.b16 %v3293, %v3292
    %v3352 = vpack.c.b16 %v3295, %v3294
    %v3353 = vpack.c.b16 %v3297, %v3296
    %v3354 = vpack.c.b16 %v3299, %v3298
    %v3355 = vpack.c.b16 %v3301, %v3300
    %v3356 = vpack.c.b16 %v3303, %v3302
    %v3357 = vpack.c.b16 %v3305, %v3304
    %v3358 = vpack.c.b16 %v3307, %v3306
    %v3359 = vpack.c.b16 %v3309, %v3308
    %v3360 = vpack.c.b16 %v3311, %v3310
    %v3361 = vpack.c.b16 %v3313, %v3312
    %v3362 = vpack.c.b16 %v3315, %v3314
    %v3363 = vpack.c.b16 %v3317, %v3316
    %v3364 = vpack.c.b16 %v3319, %v3318
    %v3365 = vpack.c.b16 %v3321, %v3320
    %v3366 = vpack.c.b16 %v3323, %v3322
    %v3367 = vpack.c.b16 %v3325, %v3324
    %v3368 = vpack.c.b16 %v3327, %v3326
    %v3369 = vpack.c.b16 %v3329, %v3328
    %v3370 = vpack.c.b16 %v3331, %v3330
    %v3371 = vpack.c.b16 %v3333, %v3332
    %v3372 = vpack.c.b16 %v3335, %v3334
    %v3373 = vpack.c.b16 %v3337, %v3336
    %v3374 = vpack.c.b16 %v3339, %v3338
    %v3375 = vpack.c.b16 %v3341, %v3340
    %v3376 = vpack.c.b16 %v3343, %v3342
    %v3377 = vpack.c.b16 %v3345, %v3344
    %3410 = vmatprep.subr.bf16.mxu0 0
    %3411 = vmatpush1.bf16.msra.mxu0 %v3346
    %3412 = vmatprep.subr.bf16.mxu0 0
    %3413 = vmatpush1.bf16.msra.mxu0 %v3347
    %3414 = vmatprep.subr.bf16.mxu0 0
    %3415 = vmatpush1.bf16.msra.mxu0 %v3348
    %3416 = vmatprep.subr.bf16.mxu0 0
    %3417 = vmatpush1.bf16.msra.mxu0 %v3349
    %3418 = vmatprep.subr.bf16.mxu0 0
    %3419 = vmatpush1.bf16.msra.mxu0 %v3350
    %3420 = vmatprep.subr.bf16.mxu0 0
    %3421 = vmatpush1.bf16.msra.mxu0 %v3351
    %3422 = vmatprep.subr.bf16.mxu0 0
    %3423 = vmatpush1.bf16.msra.mxu0 %v3352
    %3424 = vmatprep.subr.bf16.mxu0 0
    %3425 = vmatpush1.bf16.msra.mxu0 %v3353
    %3426 = vmatprep.subr.bf16.mxu0 0
    %3427 = vmatpush1.bf16.msra.mxu0 %v3354
    %3428 = vmatprep.subr.bf16.mxu0 0
    %3429 = vmatpush1.bf16.msra.mxu0 %v3355
    %3430 = vmatprep.subr.bf16.mxu0 0
    %3431 = vmatpush1.bf16.msra.mxu0 %v3356
    %3432 = vmatprep.subr.bf16.mxu0 0
    %3433 = vmatpush1.bf16.msra.mxu0 %v3357
    %3434 = vmatprep.subr.bf16.mxu0 0
    %3435 = vmatpush1.bf16.msra.mxu0 %v3358
    %3436 = vmatprep.subr.bf16.mxu0 0
    %3437 = vmatpush1.bf16.msra.mxu0 %v3359
    %3438 = vmatprep.subr.bf16.mxu0 0
    %3439 = vmatpush1.bf16.msra.mxu0 %v3360
    %3440 = vmatprep.subr.bf16.mxu0 0
    %3441 = vmatpush1.bf16.msra.mxu0 %v3361
    %3442 = vmatprep.mubr.bf16.mxu0 %v3144
    %3443 = vmatmul.mubr.bf16.gmra.mrb[0].mxu0 %v3143
    %v3444 = vpop.f32.mrb[0].mxu0
    %v3445 = vadd.f32 %v3216, %v3444
    %v3446 = vpop.f32.mrb[0].mxu0
    %v3447 = vpop.f32.mrb[0].mxu0
    %v3448 = vpop.f32.mrb[0].mxu0
    %3449 = vdwg.mxu0
    %3450 = vmatprep.subr.bf16.mxu0 0
    %3451 = vmatpush1.bf16.msra.mxu0 %v3362
    %3452 = vmatprep.subr.bf16.mxu0 0
    %3453 = vmatpush1.bf16.msra.mxu0 %v3363
    %3454 = vmatprep.subr.bf16.mxu0 0
    %3455 = vmatpush1.bf16.msra.mxu0 %v3364
    %3456 = vmatprep.subr.bf16.mxu0 0
    %3457 = vmatpush1.bf16.msra.mxu0 %v3365
    %3458 = vmatprep.subr.bf16.mxu0 0
    %3459 = vmatpush1.bf16.msra.mxu0 %v3366
    %3460 = vmatprep.subr.bf16.mxu0 0
    %3461 = vmatpush1.bf16.msra.mxu0 %v3367
    %3462 = vmatprep.subr.bf16.mxu0 0
    %3463 = vmatpush1.bf16.msra.mxu0 %v3368
    %3464 = vmatprep.subr.bf16.mxu0 0
    %3465 = vmatpush1.bf16.msra.mxu0 %v3369
    %3466 = vmatprep.subr.bf16.mxu0 0
    %3467 = vmatpush1.bf16.msra.mxu0 %v3370
    %3468 = vmatprep.subr.bf16.mxu0 0
    %3469 = vmatpush1.bf16.msra.mxu0 %v3371
    %3470 = vmatprep.subr.bf16.mxu0 0
    %3471 = vmatpush1.bf16.msra.mxu0 %v3372
    %3472 = vmatprep.subr.bf16.mxu0 0
    %3473 = vmatpush1.bf16.msra.mxu0 %v3373
    %3474 = vmatprep.subr.bf16.mxu0 0
    %3475 = vmatpush1.bf16.msra.mxu0 %v3374
    %3476 = vmatprep.subr.bf16.mxu0 0
    %3477 = vmatpush1.bf16.msra.mxu0 %v3375
    %3478 = vmatprep.subr.bf16.mxu0 0
    %3479 = vmatpush1.bf16.msra.mxu0 %v3376
    %3480 = vmatprep.subr.bf16.mxu0 0
    %3481 = vmatpush1.bf16.msra.mxu0 %v3377
    %3482 = vmatprep.mubr.bf16.mxu0 %v3146
    %3483 = vmatmul.mubr.bf16.gmra.mrb[0].mxu0 %v3145
    %v3484 = vpop.f32.mrb[0].mxu0
    %v3485 = vadd.f32 %v3445, %v3484
    %v3486 = vpop.f32.mrb[0].mxu0
    %v3487 = vpop.f32.mrb[0].mxu0
    %v3488 = vpop.f32.mrb[0].mxu0
    %3489 = vdwg.mxu0
    %v3490 = vlaneseq
    %v3491 = vand.u32 %v3490, 127
    %vm3492 = vcmp.ge.s32.totalorder %v3491, 4
    %v3493 = vmax.f32 %v3485, -20.0
    %v3494 = vmin.f32 %v3493, 2.0
    %v3495 = vsel %vm3492, %v3494, %v3485
    %3496 = vst [vmem:[#allocation13] sm:$0xff] %v3495
    // Predicated region
    $region70: #{tpu_custom_call.1} parent=1 // pred_check
      _
    $region71: #{tpu_custom_call.1} parent=1 // pred_check_branch
      %3498 = sbr.rel (0) target = $region73
    $region72: #{tpu_custom_call.1} parent=1 // pred_region
      %s3500 = ssub.s32 128, 128
      %3501 = vsyncadd [#allocation4], %s3500
      %s3503 = sshll.u32 [#allocation13], 4
      %s3504 = int_to_ptr.vmem [resolvable:$true] %s3503
      %3506 = dma.vmem_to_hbm [thread:$0]  %s3504, 128, %s11, [#allocation4]
    $region73: #{tpu_custom_call.1} parent=1 // pred_fallthru
      _
    // Predicated region
    $region74: #{tpu_custom_call.1} parent=1 // pred_check
      _
    $region75: #{tpu_custom_call.1} parent=1 // pred_check_branch
      %3508 = sbr.rel (0) target = $region77
    $region76: #{tpu_custom_call.1} parent=1 // pred_region
      %3509 = dma.done [#allocation4], 128
    $region77: #{tpu_custom_call.1} parent=1 // pred_fallthru
      _
    %3510 = vsyncpa [#allocation3], 1
    %3511 = vsyncpa [#allocation6], 1
    %3512 = vsyncpa [#allocation9], 1
    %3513 = vsyncpa [#allocation12], 1
    %3514 = vsyncpa [#allocation4], 1

</llo_original>
